<compile_context>
chip_gen: v7x
topology: tpu7x:2x2x1
jax: 0.10.0
libtpu: 0.0.40
codegen_flags: <defaults>
</compile_context>

<pallas_src>
import math
import numpy as np
import jax
import jax.numpy as jnp
from jax import lax
from jax.experimental import pallas as pl
from jax.experimental.pallas import tpu as pltpu

# ---- constants from CycleS.__init__ / global config C ----------------------
DELTA = 0.5
EPSILON = 0.1
MARGIN = 0.5                              # C.MARGIN (fixed here)
LOSS_TERMS = ("pairwise", "triplewise")   # C.LOSS   (both terms enabled)


# ---------------------------------------------------------------------------
# Fused kernel: normalize -> one flat similarity matmul -> batched pairwise +
# triplewise cycle losses -> single scalar.
# ---------------------------------------------------------------------------
def _make_cycles_kernel(V, N, D, pairs, triples):
    use_pair = ("pairwise" in LOSS_TERMS) and len(pairs) > 0
    use_trip = ("triplewise" in LOSS_TERMS) and len(triples) > 0
    P = len(pairs) if use_pair else 0
    T = len(triples) if use_trip else 0
    B = P + T
    assert B > 0, "no loss terms enabled"

    # softmax scale (square blocks: scale12 == scale21 == log(N)/eps for delta=0.5)
    scale = math.log(DELTA / (1.0 - DELTA) * N) / EPSILON
    # fold the /(2N) per-block normalization and the /P, /T averaging into weights
    w_pair = 1.0 / (2.0 * N * P) if use_pair else 0.0
    w_trip = 1.0 / (2.0 * N * T) if use_trip else 0.0

    def kernel(xf_ref, loss_ref):
        x = xf_ref[...].astype(jnp.float32)                       # (V*N, D)

        # torch.nn.functional.normalize(..., dim=-1, eps=1e-12), done ONCE.
        nrm = jnp.sqrt(jnp.sum(x * x, axis=-1, keepdims=True))
        xn = x / jnp.maximum(nrm, 1e-12)                          # (V*N, D)

        # ONE flattened similarity matmul (A @ A^T via contraction on last dims;
        # no explicit transpose, MXU handles the operand orientation).
        S_flat = lax.dot_general(
            xn, xn, dimension_numbers=(((1,), (1,)), ((), ())),
            preferred_element_type=jnp.float32)                   # (V*N, V*N), symmetric
        # TODO(synk): at N >= 128 feed bf16 operands here (keep f32 accumulation).

        def blk(a, b):  # static (N, N) slice == S[a][b] of the reference
            return S_flat[a * N:(a + 1) * N, b * N:(b + 1) * N]

        blocks = []
        if use_pair:
            for (i, j) in pairs:
                blocks.append(blk(i, j))
        if use_trip:
            for (i, j, k) in triples:
                # S_ik @ S_kj == S_ik @ S_jk^T   (S_flat is symmetric)
                blocks.append(lax.dot_general(
                    blk(i, k), blk(j, k),
                    dimension_numbers=(((1,), (1,)), ((), ())),
                    preferred_element_type=jnp.float32))
        Sb = jnp.stack(blocks)                                    # (B, N, N)

        # ---- shared-exp row/column softmax ------------------------------------
        logits = Sb * scale
        m = jnp.max(jnp.max(logits, axis=2, keepdims=True),
                    axis=1, keepdims=True)                        # per-block max
        E = jnp.exp(logits - m)                                   # (B, N, N)
        inv_row = pl.reciprocal(jnp.sum(E, axis=2, keepdims=True), approx=True)
        inv_col = pl.reciprocal(jnp.sum(E, axis=1, keepdims=True), approx=True)
        A = E * inv_row        # row softmax                  == S12_hat
        Ccol = E * inv_col     # column softmax; Ccol[b,k,j]  == S21_hat[b,j,k]

        # cycle matrix  P[b,i,k] = sum_j S12_hat[b,i,j] * S21_hat[b,j,k]
        p_ = jnp.einsum('bij,bkj->bik', A, Ccol,
                        preferred_element_type=jnp.float32)       # (B, N, N)
        # diag(P) directly: diag(A @ C^T) = rowsum(A * C) — no mask/select needed
        pos = jnp.sum(A * Ccol, axis=2)                           # (B, N)

        row = lax.broadcasted_iota(jnp.int32, (N, N), 0)
        col = lax.broadcasted_iota(jnp.int32, (N, N), 1)
        eye = (row == col)[None, :, :]                            # (1, N, N)
        neg = jnp.where(eye, 0.0, p_)                             # off-diagonal
        rmax = jnp.max(neg, axis=2)                               # (B, N)
        cmax = jnp.max(neg, axis=1)                               # (B, N)
        hinge = (jnp.maximum(rmax + MARGIN - pos, 0.0)
                 + jnp.maximum(cmax + MARGIN - pos, 0.0))         # (B, N)

        # one weight multiply folds all averaging constants
        w = jnp.where(lax.broadcasted_iota(jnp.int32, (B, N), 0) < P,
                      jnp.float32(w_pair), jnp.float32(w_trip))
        loss_ref[0, 0] = jnp.sum(hinge * w)

    return kernel


def cycle_s_forward(feats):
    V, N, D = feats.shape
    pairs = tuple((i, j) for i in range(V) for j in range(V) if i < j)
    triples = tuple((i, j, k)
                    for i in range(V) for j in range(V) if i < j
                    for k in range(V) if k != i and k != j)

    kernel = _make_cycles_kernel(V, N, D, pairs, triples)

    out = pl.pallas_call(
        kernel,
        out_shape=jax.ShapeDtypeStruct((1, 1), jnp.float32),
        in_specs=[pl.BlockSpec(memory_space=pltpu.MemorySpace.VMEM)],
        out_specs=pl.BlockSpec(memory_space=pltpu.MemorySpace.SMEM),
    )(feats.reshape(V * N, D))
    return out[0, 0]


# ---------------------------------------------------------------------------
# Pure-JAX reference (mirrors the PyTorch code) for a correctness check.
# ---------------------------------------------------------------------------
def cycle_s_reference(feats):
    V, N, D = feats.shape
    fn = feats / jnp.maximum(jnp.linalg.norm(feats, axis=-1, keepdims=True), 1e-12)
    S = jnp.einsum("ind,jmd->ijnm", fn, fn)

    def cyc(M):
        n, m = M.shape
        s12 = math.log(DELTA / (1 - DELTA) * m) / EPSILON
        s21 = math.log(DELTA / (1 - DELTA) * n) / EPSILON
        A = jax.nn.softmax(M * s12, axis=1)
        B = jax.nn.softmax(M.T * s21, axis=1)
        P_ = A @ B
        I = jnp.eye(n, dtype=P_.dtype)
        pos = jnp.diag(P_)
        neg = P_ * (1 - I)
        l = jnp.sum(jax.nn.relu(jnp.max(neg, axis=1) + MARGIN - pos))
        l = l + jnp.sum(jax.nn.relu(jnp.max(neg, axis=0) + MARGIN - pos))
        return l / (2 * n)

    total = jnp.float32(0.0)
    if "pairwise" in LOSS_TERMS:
        vals = [cyc(S[i, j]) for i in range(V) for j in range(V) if i < j]
        total = total + sum(vals) / len(vals)
    if "triplewise" in LOSS_TERMS:
        vals = [cyc(S[i, k] @ S[k, j])
                for i in range(V) for j in range(V) if i < j
                for k in range(V) if k != i and k != j]
        total = total + sum(vals) / len(vals)
    return total


if __name__ == "__main__":
    V, N, D = 3, 16, 32        # 3 views, 16 detections each, 32-dim features
    key = jax.random.PRNGKey(0)
    feats = jax.random.normal(key, (V, N, D), dtype=jnp.float32)

    out = cycle_s_forward(feats)
    out = jax.block_until_ready(out)

    ref = jax.block_until_ready(cycle_s_reference(feats))
    assert np.isfinite(float(out))
    assert np.allclose(float(out), float(ref), rtol=1e-2, atol=1e-2), (float(out), float(ref))

    print("KERNEL_OK")
</pallas_src>

<mosaic_0001>
module attributes {stable_mosaic.version = 11 : i64} {
  func.func @kernel(%arg0: memref<48x32xf32, #tpu.memory_space<vmem>>, %arg1: memref<1x1xf32, #tpu.memory_space<smem>>) attributes {dimension_semantics = [], scalar_prefetch = 0 : i64, scratch_operands = 0 : i64, tpu.core_type = #tpu.core_type<tc>} {
    %c0 = arith.constant 0 : index
    %c0_0 = arith.constant 0 : index
    %0 = vector.load %arg0[%c0, %c0_0] : memref<48x32xf32, #tpu.memory_space<vmem>>, vector<48x32xf32>
    %1 = arith.mulf %0, %0 : vector<48x32xf32>
    %cst = arith.constant dense<0.000000e+00> : vector<48xf32>
    %2 = vector.multi_reduction <add>, %1, %cst [1] : vector<48x32xf32> to vector<48xf32>
    %3 = vector.shape_cast %2 : vector<48xf32> to vector<48x1xf32>
    %4 = math.sqrt %3 : vector<48x1xf32>
    %cst_1 = arith.constant 9.99999996E-13 : f32
    %5 = vector.broadcast %cst_1 : f32 to vector<48x1xf32>
    %6 = arith.maximumf %4, %5 : vector<48x1xf32>
    %7 = vector.broadcast %6 : vector<48x1xf32> to vector<48x32xf32>
    %8 = arith.divf %0, %7 : vector<48x32xf32>
    %cst_2 = arith.constant dense<0.000000e+00> : vector<48x48xf32>
    %9 = tpu.matmul %8, %8, %cst_2 {dimension_numbers = #tpu.dot_dimension_numbers<[1], [1], [0], [0], [0, 0, 1, 0], [], []>} : vector<48x32xf32>, vector<48x32xf32>, vector<48x48xf32> -> vector<48x48xf32>
    %10 = vector.extract_strided_slice %9 {offsets = [0, 16], sizes = [16, 16], strides = [1, 1]} : vector<48x48xf32> to vector<16x16xf32>
    %11 = vector.extract_strided_slice %9 {offsets = [0, 32], sizes = [16, 16], strides = [1, 1]} : vector<48x48xf32> to vector<16x16xf32>
    %12 = vector.extract_strided_slice %9 {offsets = [16, 32], sizes = [16, 16], strides = [1, 1]} : vector<48x48xf32> to vector<16x16xf32>
    %13 = vector.extract_strided_slice %9 {offsets = [0, 32], sizes = [16, 16], strides = [1, 1]} : vector<48x48xf32> to vector<16x16xf32>
    %14 = vector.extract_strided_slice %9 {offsets = [16, 32], sizes = [16, 16], strides = [1, 1]} : vector<48x48xf32> to vector<16x16xf32>
    %cst_3 = arith.constant dense<0.000000e+00> : vector<16x16xf32>
    %15 = tpu.matmul %13, %14, %cst_3 {dimension_numbers = #tpu.dot_dimension_numbers<[1], [1], [0], [0], [0, 0, 1, 0], [], []>} : vector<16x16xf32>, vector<16x16xf32>, vector<16x16xf32> -> vector<16x16xf32>
    %16 = vector.extract_strided_slice %9 {offsets = [0, 16], sizes = [16, 16], strides = [1, 1]} : vector<48x48xf32> to vector<16x16xf32>
    %17 = vector.extract_strided_slice %9 {offsets = [32, 16], sizes = [16, 16], strides = [1, 1]} : vector<48x48xf32> to vector<16x16xf32>
    %cst_4 = arith.constant dense<0.000000e+00> : vector<16x16xf32>
    %18 = tpu.matmul %16, %17, %cst_4 {dimension_numbers = #tpu.dot_dimension_numbers<[1], [1], [0], [0], [0, 0, 1, 0], [], []>} : vector<16x16xf32>, vector<16x16xf32>, vector<16x16xf32> -> vector<16x16xf32>
    %19 = vector.extract_strided_slice %9 {offsets = [16, 0], sizes = [16, 16], strides = [1, 1]} : vector<48x48xf32> to vector<16x16xf32>
    %20 = vector.extract_strided_slice %9 {offsets = [32, 0], sizes = [16, 16], strides = [1, 1]} : vector<48x48xf32> to vector<16x16xf32>
    %cst_5 = arith.constant dense<0.000000e+00> : vector<16x16xf32>
    %21 = tpu.matmul %19, %20, %cst_5 {dimension_numbers = #tpu.dot_dimension_numbers<[1], [1], [0], [0], [0, 0, 1, 0], [], []>} : vector<16x16xf32>, vector<16x16xf32>, vector<16x16xf32> -> vector<16x16xf32>
    %22 = vector.shape_cast %10 : vector<16x16xf32> to vector<1x16x16xf32>
    %23 = vector.shape_cast %11 : vector<16x16xf32> to vector<1x16x16xf32>
    %24 = vector.shape_cast %12 : vector<16x16xf32> to vector<1x16x16xf32>
    %25 = vector.shape_cast %15 : vector<16x16xf32> to vector<1x16x16xf32>
    %26 = vector.shape_cast %18 : vector<16x16xf32> to vector<1x16x16xf32>
    %27 = vector.shape_cast %21 : vector<16x16xf32> to vector<1x16x16xf32>
    %28 = tpu.concatenate %22, %23, %24, %25, %26, %27 in 0 : vector<1x16x16xf32>, vector<1x16x16xf32>, vector<1x16x16xf32>, vector<1x16x16xf32>, vector<1x16x16xf32>, vector<1x16x16xf32> -> vector<6x16x16xf32>
    %cst_6 = arith.constant 27.7258873 : f32
    %29 = vector.broadcast %cst_6 : f32 to vector<6x16x16xf32>
    %30 = arith.mulf %28, %29 : vector<6x16x16xf32>
    %cst_7 = arith.constant dense<0xFF800000> : vector<6x16xf32>
    %31 = vector.multi_reduction <maximumf>, %30, %cst_7 [2] : vector<6x16x16xf32> to vector<6x16xf32>
    %32 = vector.shape_cast %31 : vector<6x16xf32> to vector<6x16x1xf32>
    %cst_8 = arith.constant dense<0xFF800000> : vector<6x1xf32>
    %33 = vector.multi_reduction <maximumf>, %32, %cst_8 [1] : vector<6x16x1xf32> to vector<6x1xf32>
    %34 = vector.shape_cast %33 : vector<6x1xf32> to vector<6x1x1xf32>
    %35 = vector.broadcast %34 : vector<6x1x1xf32> to vector<6x16x16xf32>
    %36 = arith.subf %30, %35 : vector<6x16x16xf32>
    %37 = math.exp %36 : vector<6x16x16xf32>
    %cst_9 = arith.constant dense<0.000000e+00> : vector<6x16xf32>
    %38 = vector.multi_reduction <add>, %37, %cst_9 [2] : vector<6x16x16xf32> to vector<6x16xf32>
    %39 = vector.shape_cast %38 : vector<6x16xf32> to vector<6x16x1xf32>
    %40 = tpu.reciprocal %39 {approx = true} : vector<6x16x1xf32> -> vector<6x16x1xf32>
    %cst_10 = arith.constant dense<0.000000e+00> : vector<6x16xf32>
    %41 = vector.multi_reduction <add>, %37, %cst_10 [1] : vector<6x16x16xf32> to vector<6x16xf32>
    %42 = vector.shape_cast %41 : vector<6x16xf32> to vector<6x1x16xf32>
    %43 = tpu.reciprocal %42 {approx = true} : vector<6x1x16xf32> -> vector<6x1x16xf32>
    %44 = vector.broadcast %40 : vector<6x16x1xf32> to vector<6x16x16xf32>
    %45 = arith.mulf %37, %44 : vector<6x16x16xf32>
    %46 = vector.broadcast %43 : vector<6x1x16xf32> to vector<6x16x16xf32>
    %47 = arith.mulf %37, %46 : vector<6x16x16xf32>
    "tpu.trace_start"() <{level = 10 : i32, message = "bij,bkj->bik"}> : () -> ()
    %cst_11 = arith.constant dense<0.000000e+00> : vector<6x16x16xf32>
    %48 = tpu.matmul %45, %47, %cst_11 {dimension_numbers = #tpu.dot_dimension_numbers<[2], [2], [1], [1], [0, 0, 0, 1, 1, 1], [0], [0]>} : vector<6x16x16xf32>, vector<6x16x16xf32>, vector<6x16x16xf32> -> vector<6x16x16xf32>
    "tpu.trace_stop"() : () -> ()
    %49 = arith.mulf %45, %47 : vector<6x16x16xf32>
    %cst_12 = arith.constant dense<0.000000e+00> : vector<6x16xf32>
    %50 = vector.multi_reduction <add>, %49, %cst_12 [2] : vector<6x16x16xf32> to vector<6x16xf32>
    %51 = tpu.iota {dimensions = array<i32: 0>} : vector<16x16xi32>
    %52 = tpu.iota {dimensions = array<i32: 1>} : vector<16x16xi32>
    %53 = arith.cmpi eq, %51, %52 : vector<16x16xi32>
    %54 = vector.shape_cast %53 : vector<16x16xi1> to vector<1x16x16xi1>
    %cst_13 = arith.constant 0.000000e+00 : f32
    %55 = vector.shape_cast %54 : vector<1x16x16xi1> to vector<1x16x16xi1>
    %56 = vector.broadcast %55 : vector<1x16x16xi1> to vector<6x16x16xi1>
    %57 = vector.broadcast %cst_13 : f32 to vector<6x16x16xf32>
    %58 = arith.select %56, %57, %48 : vector<6x16x16xi1>, vector<6x16x16xf32>
    %cst_14 = arith.constant dense<0xFF800000> : vector<6x16xf32>
    %59 = vector.multi_reduction <maximumf>, %58, %cst_14 [2] : vector<6x16x16xf32> to vector<6x16xf32>
    %cst_15 = arith.constant dense<0xFF800000> : vector<6x16xf32>
    %60 = vector.multi_reduction <maximumf>, %58, %cst_15 [1] : vector<6x16x16xf32> to vector<6x16xf32>
    %cst_16 = arith.constant 5.000000e-01 : f32
    %61 = vector.broadcast %cst_16 : f32 to vector<6x16xf32>
    %62 = arith.addf %59, %61 : vector<6x16xf32>
    %63 = arith.subf %62, %50 : vector<6x16xf32>
    %cst_17 = arith.constant 0.000000e+00 : f32
    %64 = vector.broadcast %cst_17 : f32 to vector<6x16xf32>
    %65 = arith.maximumf %63, %64 : vector<6x16xf32>
    %cst_18 = arith.constant 5.000000e-01 : f32
    %66 = vector.broadcast %cst_18 : f32 to vector<6x16xf32>
    %67 = arith.addf %60, %66 : vector<6x16xf32>
    %68 = arith.subf %67, %50 : vector<6x16xf32>
    %cst_19 = arith.constant 0.000000e+00 : f32
    %69 = vector.broadcast %cst_19 : f32 to vector<6x16xf32>
    %70 = arith.maximumf %68, %69 : vector<6x16xf32>
    %71 = arith.addf %65, %70 : vector<6x16xf32>
    %72 = tpu.iota {dimensions = array<i32: 0>} : vector<6x16xi32>
    %c3_i32 = arith.constant 3 : i32
    %73 = vector.broadcast %c3_i32 : i32 to vector<6x16xi32>
    %74 = arith.cmpi slt, %72, %73 : vector<6x16xi32>
    %cst_20 = arith.constant 0.010416667 : f32
    %cst_21 = arith.constant 0.010416667 : f32
    %75 = vector.broadcast %cst_20 : f32 to vector<6x16xf32>
    %76 = vector.broadcast %cst_21 : f32 to vector<6x16xf32>
    %77 = arith.select %74, %75, %76 : vector<6x16xi1>, vector<6x16xf32>
    %78 = arith.mulf %71, %77 : vector<6x16xf32>
    %79 = vector.shape_cast %78 : vector<6x16xf32> to vector<1x6x16xf32>
    %cst_22 = arith.constant dense<0.000000e+00> : vector<1xf32>
    %80 = vector.multi_reduction <add>, %79, %cst_22 [1, 2] : vector<1x6x16xf32> to vector<1xf32>
    %81 = vector.shape_cast %80 : vector<1xf32> to vector<1x1x1xf32>
    %82 = vector.extract %81[0, 0, 0] : f32 from vector<1x1x1xf32>
    %c0_23 = arith.constant 0 : index
    %c0_24 = arith.constant 0 : index
    %83 = memref.load %arg1[%c0_23, %c0_24] : memref<1x1xf32, #tpu.memory_space<smem>>
    memref.store %82, %arg1[%c0_23, %c0_24] : memref<1x1xf32, #tpu.memory_space<smem>>
    return
  }
}

</mosaic_0001>

<llo_original>
// kernel: tpu_custom_call.1
$region0: #{tpu_custom_call.1}
  #allocation0 [shape = 'u32[]', space=smem, size = 0x4, offset = 0x4, fixed_abs, tag = 'smem constant byte address 0x4 - core index']
  #allocation1 [shape = 'u32[144,128]{1,0:T(1,128)}', space=vmem, size = 0x12000, scoped, tag = 'internal scratch']
  %s0 = inlined_call_operand.vmem [shape: f32[48,32], index: 0, kind: input, shape index: {}]
  %s1 = inlined_call_operand.hbm [shape: f32[1,1], index: 1, kind: output, shape index: {}]
  %s2 = sld [smem:[#allocation0]]
  $region14: #{tpu_custom_call.1} parent=0
    _
  %s4 = ssub.s32 1, %s2
  %s5 = scalar_select 0, %s4, %s2
  $region1: #{tpu_custom_call.1} parent=0
    #allocation2 [shape = 'u8[512]{0}', space=smem, size = 0x200, scoped, tag = 'output window, operand 0, single buffered']
    #allocation3 [shape = 's32[1]{0}', space=sflag, size = 0x4, scoped, tag = 'scoped memory for tpu_custom_call.1']
    %6 = vsyncpa [#allocation3], 0
    // Predicated region
    $region2: #{tpu_custom_call.1} parent=1 // pred_check
      _
    $region3: #{tpu_custom_call.1} parent=1 // pred_check_branch
      %8 = sbr.rel (0) target = $region5
    $region4: #{tpu_custom_call.1} parent=1 // pred_region
      _
    $region5: #{tpu_custom_call.1} parent=1 // pred_fallthru
      _
    %v9 = vld [vmem:[%s0] sm:$0xff]
    %v10 = vld [vmem:[%s0 + $0x8] sm:$0xff]
    %v11 = vld [vmem:[%s0 + $0x10] sm:$0xff]
    %v12 = vld [vmem:[%s0 + $0x18] sm:$0xff]
    %v13 = vld [vmem:[%s0 + $0x20] sm:$0xff]
    %v14 = vld [vmem:[%s0 + $0x28] sm:$0xff]
    %v15 = vmul.f32 %v9, %v9
    %v16 = vmul.f32 %v10, %v10
    %v17 = vmul.f32 %v11, %v11
    %v18 = vmul.f32 %v12, %v12
    %v19 = vmul.f32 %v13, %v13
    %v20 = vmul.f32 %v14, %v14
    %vm21 = vcmask 261120
    %v22 = vsel %vm21, %v15, 0.0
    %23 = vadd.xlane.f32.xlu0 %v22
    %v24 = vpop.xlane.xlu0 %23
    %v25 = vsel %vm21, %v16, 0.0
    %26 = vadd.xlane.f32.xlu0 %v25
    %v27 = vpop.xlane.xlu0 %26
    %v28 = vsel %vm21, %v17, 0.0
    %29 = vadd.xlane.f32.xlu0 %v28
    %v30 = vpop.xlane.xlu0 %29
    %v31 = vsel %vm21, %v18, 0.0
    %32 = vadd.xlane.f32.xlu0 %v31
    %v33 = vpop.xlane.xlu0 %32
    %v34 = vsel %vm21, %v19, 0.0
    %35 = vadd.xlane.f32.xlu0 %v34
    %v36 = vpop.xlane.xlu0 %35
    %v37 = vsel %vm21, %v20, 0.0
    %38 = vadd.xlane.f32.xlu0 %v37
    %v39 = vpop.xlane.xlu0 %38
    %v40 = vrsqrt.pop %v24
    %v41 = vmul.f32 %v24, %v40
    %vm42 = vcmp.eq.f32.partialorder %v24, inf
    %v43 = vsel %vm42, %v24, %v41
    %vm44 = vcmp.eq.f32.partialorder %v24, 0.0
    %v45 = vand.u32 %v24, 2147483648
    %v46 = vsel %vm44, %v45, %v43
    %v47 = vrsqrt.pop %v27
    %v48 = vmul.f32 %v27, %v47
    %vm49 = vcmp.eq.f32.partialorder %v27, inf
    %v50 = vsel %vm49, %v27, %v48
    %vm51 = vcmp.eq.f32.partialorder %v27, 0.0
    %v52 = vand.u32 %v27, 2147483648
    %v53 = vsel %vm51, %v52, %v50
    %v54 = vrsqrt.pop %v30
    %v55 = vmul.f32 %v30, %v54
    %vm56 = vcmp.eq.f32.partialorder %v30, inf
    %v57 = vsel %vm56, %v30, %v55
    %vm58 = vcmp.eq.f32.partialorder %v30, 0.0
    %v59 = vand.u32 %v30, 2147483648
    %v60 = vsel %vm58, %v59, %v57
    %v61 = vrsqrt.pop %v33
    %v62 = vmul.f32 %v33, %v61
    %vm63 = vcmp.eq.f32.partialorder %v33, inf
    %v64 = vsel %vm63, %v33, %v62
    %vm65 = vcmp.eq.f32.partialorder %v33, 0.0
    %v66 = vand.u32 %v33, 2147483648
    %v67 = vsel %vm65, %v66, %v64
    %v68 = vrsqrt.pop %v36
    %v69 = vmul.f32 %v36, %v68
    %vm70 = vcmp.eq.f32.partialorder %v36, inf
    %v71 = vsel %vm70, %v36, %v69
    %vm72 = vcmp.eq.f32.partialorder %v36, 0.0
    %v73 = vand.u32 %v36, 2147483648
    %v74 = vsel %vm72, %v73, %v71
    %v75 = vrsqrt.pop %v39
    %v76 = vmul.f32 %v39, %v75
    %vm77 = vcmp.eq.f32.partialorder %v39, inf
    %v78 = vsel %vm77, %v39, %v76
    %vm79 = vcmp.eq.f32.partialorder %v39, 0.0
    %v80 = vand.u32 %v39, 2147483648
    %v81 = vsel %vm79, %v80, %v78
    %v82 = vmax.f32 %v46, 1e-12
    %v83 = vmax.f32 %v53, 1e-12
    %v84 = vmax.f32 %v60, 1e-12
    %v85 = vmax.f32 %v67, 1e-12
    %v86 = vmax.f32 %v74, 1e-12
    %v87 = vmax.f32 %v81, 1e-12
    %v88 = vrcp.pop %v82
    %v89 = vmul.f32 %v9, %v88
    %v90 = vrcp.pop %v83
    %v91 = vmul.f32 %v10, %v90
    %v92 = vrcp.pop %v84
    %v93 = vmul.f32 %v11, %v92
    %v94 = vrcp.pop %v85
    %v95 = vmul.f32 %v12, %v94
    %v96 = vrcp.pop %v86
    %v97 = vmul.f32 %v13, %v96
    %v98 = vrcp.pop %v87
    %v99 = vmul.f32 %v14, %v98
    %v101 = vsel %vm21, %v89, 0
    %v104 = vsel %vm21, %v91, 0
    %v107 = vsel %vm21, %v93, 0
    %v110 = vsel %vm21, %v95, 0
    %v113 = vsel %vm21, %v97, 0
    %v116 = vsel %vm21, %v99, 0
    %118 = vmatprep.subr.mxu0 0.0
    %119 = vmatpush1.xpose.msra.mxu0 %v101
    %120 = vmatprep.subr.mxu0 0.0
    %121 = vmatpush1.xpose.msra.mxu0 %v104
    %122 = vmatprep.subr.mxu0 0.0
    %123 = vmatpush1.xpose.msra.mxu0 %v107
    %124 = vmatprep.subr.mxu0 0.0
    %125 = vmatpush1.xpose.msra.mxu0 %v110
    %126 = vmatprep.subr.mxu0 0.0
    %127 = vmatpush1.xpose.msra.mxu0 %v113
    %128 = vmatprep.subr.mxu0 0.0
    %129 = vmatpush1.xpose.msra.mxu0 %v116
    %130 = vmatprep.subr.mxu0 0.0
    %131 = vmatpush1.xpose.msra.mxu0 0.0
    %132 = vmatprep.subr.mxu0 0.0
    %133 = vmatpush1.xpose.msra.mxu0 0.0
    %134 = vmatprep.subr.mxu0 0.0
    %135 = vmatpush1.xpose.msra.mxu0 0.0
    %136 = vmatprep.subr.mxu0 0.0
    %137 = vmatpush1.xpose.msra.mxu0 0.0
    %138 = vmatprep.subr.mxu0 0.0
    %139 = vmatpush1.xpose.msra.mxu0 0.0
    %140 = vmatprep.subr.mxu0 0.0
    %141 = vmatpush1.xpose.msra.mxu0 0.0
    %142 = vmatprep.subr.mxu0 0.0
    %143 = vmatpush1.xpose.msra.mxu0 0.0
    %144 = vmatprep.subr.mxu0 0.0
    %145 = vmatpush1.xpose.msra.mxu0 0.0
    %146 = vmatprep.subr.mxu0 0.0
    %147 = vmatpush1.xpose.msra.mxu0 0.0
    %148 = vmatprep.subr.mxu0 0.0
    %149 = vmatpush1.xpose.msra.mxu0 0.0
    %150 = vmatprep.subr.mxu0 0.0
    %151 = vmatpush1.xpose.msra.mxu0 0.0
    %152 = vmatprep.subr.mxu0 0.0
    %153 = vmatpush1.xpose.msra.mxu0 0.0
    %154 = vmatprep.subr.mxu0 0.0
    %155 = vmatpush1.xpose.msra.mxu0 0.0
    %156 = vmatprep.subr.mxu0 0.0
    %157 = vmatpush1.xpose.msra.mxu0 0.0
    %158 = vmatprep.subr.mxu0 0.0
    %159 = vmatpush1.xpose.msra.mxu0 0.0
    %160 = vmatprep.subr.mxu0 0.0
    %161 = vmatpush1.xpose.msra.mxu0 0.0
    %162 = vmatprep.subr.mxu0 0.0
    %163 = vmatpush1.xpose.msra.mxu0 0.0
    %164 = vmatprep.subr.mxu0 0.0
    %165 = vmatpush1.xpose.msra.mxu0 0.0
    %166 = vmatprep.subr.mxu0 0.0
    %167 = vmatpush1.xpose.msra.mxu0 0.0
    %168 = vmatprep.subr.mxu0 0.0
    %169 = vmatpush1.xpose.msra.mxu0 0.0
    %170 = vmatprep.subr.mxu0 0.0
    %171 = vmatpush1.xpose.msra.mxu0 0.0
    %172 = vmatprep.subr.mxu0 0.0
    %173 = vmatpush1.xpose.msra.mxu0 0.0
    %174 = vmatprep.subr.mxu0 0.0
    %175 = vmatpush1.xpose.msra.mxu0 0.0
    %176 = vmatprep.subr.mxu0 0.0
    %177 = vmatpush1.xpose.msra.mxu0 0.0
    %178 = vmatprep.subr.mxu0 0.0
    %179 = vmatpush1.xpose.msra.mxu0 0.0
    %180 = vmatprep.subr.mxu0 0.0
    %181 = vmatpush1.xpose.msra.mxu0 0.0
    %182 = vmatprep.mubr.f32.mxu0 0.0
    %183 = vmatmul.mubr.f32.gmra.mrb[0].mxu0 %v101
    %v184 = vpop.f32.mrb[0].mxu0
    %v185 = vadd.f32 0.0, %v184
    %v186 = vpop.f32.mrb[0].mxu0
    %187 = vmatprep.mubr.f32.mxu0 0.0
    %188 = vmatmul.mubr.f32.gmra.mrb[0].mxu0 %v104
    %v189 = vpop.f32.mrb[0].mxu0
    %v190 = vadd.f32 0.0, %v189
    %v191 = vpop.f32.mrb[0].mxu0
    %192 = vmatprep.mubr.f32.mxu0 0.0
    %193 = vmatmul.mubr.f32.gmra.mrb[0].mxu0 %v107
    %v194 = vpop.f32.mrb[0].mxu0
    %v195 = vadd.f32 0.0, %v194
    %v196 = vpop.f32.mrb[0].mxu0
    %197 = vmatprep.mubr.f32.mxu0 0.0
    %198 = vmatmul.mubr.f32.gmra.mrb[0].mxu0 %v110
    %v199 = vpop.f32.mrb[0].mxu0
    %v200 = vadd.f32 0.0, %v199
    %v201 = vpop.f32.mrb[0].mxu0
    %202 = vmatprep.mubr.f32.mxu0 0.0
    %203 = vmatmul.mubr.f32.gmra.mrb[0].mxu0 %v113
    %v204 = vpop.f32.mrb[0].mxu0
    %v205 = vadd.f32 0.0, %v204
    %v206 = vpop.f32.mrb[0].mxu0
    %207 = vmatprep.mubr.f32.mxu0 0.0
    %208 = vmatmul.mubr.f32.gmra.mrb[0].mxu0 %v116
    %v209 = vpop.f32.mrb[0].mxu0
    %v210 = vadd.f32 0.0, %v209
    %v211 = vpop.f32.mrb[0].mxu0
    %212 = vdwg.mxu0
    %215 = vrot.lane.b32.xlu0 %v185, 96
    %v216 = vpop.permute.xlu0 %215
    %217 = vrot.lane.b32.xlu0 %v190, 96
    %v218 = vpop.permute.xlu0 %217
    %221 = vrot.lane.b32.xlu0 %v195, 96
    %v222 = vpop.permute.xlu0 %221
    %223 = vrot.lane.b32.xlu0 %v200, 96
    %v224 = vpop.permute.xlu0 %223
    %vm225 = vcmask 130048
    %v226 = vsel %vm225, %v216, 0
    %v228 = vsel %vm225, %v218, 0
    %v230 = vsel %vm225, %v222, 0
    %v232 = vsel %vm225, %v224, 0
    %234 = vmatprep.subr.mxu0 0.0
    %235 = vmatpush1.xpose.msra.mxu0 %v230
    %236 = vmatprep.subr.mxu0 0.0
    %237 = vmatpush1.xpose.msra.mxu0 %v232
    %238 = vmatprep.subr.mxu0 0.0
    %239 = vmatpush1.xpose.msra.mxu0 0.0
    %240 = vmatprep.subr.mxu0 0.0
    %241 = vmatpush1.xpose.msra.mxu0 0.0
    %242 = vmatprep.subr.mxu0 0.0
    %243 = vmatpush1.xpose.msra.mxu0 0.0
    %244 = vmatprep.subr.mxu0 0.0
    %245 = vmatpush1.xpose.msra.mxu0 0.0
    %246 = vmatprep.subr.mxu0 0.0
    %247 = vmatpush1.xpose.msra.mxu0 0.0
    %248 = vmatprep.subr.mxu0 0.0
    %249 = vmatpush1.xpose.msra.mxu0 0.0
    %250 = vmatprep.subr.mxu0 0.0
    %251 = vmatpush1.xpose.msra.mxu0 0.0
    %252 = vmatprep.subr.mxu0 0.0
    %253 = vmatpush1.xpose.msra.mxu0 0.0
    %254 = vmatprep.subr.mxu0 0.0
    %255 = vmatpush1.xpose.msra.mxu0 0.0
    %256 = vmatprep.subr.mxu0 0.0
    %257 = vmatpush1.xpose.msra.mxu0 0.0
    %258 = vmatprep.subr.mxu0 0.0
    %259 = vmatpush1.xpose.msra.mxu0 0.0
    %260 = vmatprep.subr.mxu0 0.0
    %261 = vmatpush1.xpose.msra.mxu0 0.0
    %262 = vmatprep.subr.mxu0 0.0
    %263 = vmatpush1.xpose.msra.mxu0 0.0
    %264 = vmatprep.subr.mxu0 0.0
    %265 = vmatpush1.xpose.msra.mxu0 0.0
    %266 = vmatprep.subr.mxu0 0.0
    %267 = vmatpush1.xpose.msra.mxu0 0.0
    %268 = vmatprep.subr.mxu0 0.0
    %269 = vmatpush1.xpose.msra.mxu0 0.0
    %270 = vmatprep.subr.mxu0 0.0
    %271 = vmatpush1.xpose.msra.mxu0 0.0
    %272 = vmatprep.subr.mxu0 0.0
    %273 = vmatpush1.xpose.msra.mxu0 0.0
    %274 = vmatprep.subr.mxu0 0.0
    %275 = vmatpush1.xpose.msra.mxu0 0.0
    %276 = vmatprep.subr.mxu0 0.0
    %277 = vmatpush1.xpose.msra.mxu0 0.0
    %278 = vmatprep.subr.mxu0 0.0
    %279 = vmatpush1.xpose.msra.mxu0 0.0
    %280 = vmatprep.subr.mxu0 0.0
    %281 = vmatpush1.xpose.msra.mxu0 0.0
    %282 = vmatprep.subr.mxu0 0.0
    %283 = vmatpush1.xpose.msra.mxu0 0.0
    %284 = vmatprep.subr.mxu0 0.0
    %285 = vmatpush1.xpose.msra.mxu0 0.0
    %286 = vmatprep.subr.mxu0 0.0
    %287 = vmatpush1.xpose.msra.mxu0 0.0
    %288 = vmatprep.subr.mxu0 0.0
    %289 = vmatpush1.xpose.msra.mxu0 0.0
    %290 = vmatprep.subr.mxu0 0.0
    %291 = vmatpush1.xpose.msra.mxu0 0.0
    %292 = vmatprep.subr.mxu0 0.0
    %293 = vmatpush1.xpose.msra.mxu0 0.0
    %294 = vmatprep.subr.mxu0 0.0
    %295 = vmatpush1.xpose.msra.mxu0 0.0
    %296 = vmatprep.subr.mxu0 0.0
    %297 = vmatpush1.xpose.msra.mxu0 0.0
    %298 = vmatprep.mubr.f32.mxu0 0.0
    %299 = vmatmul.mubr.f32.gmra.mrb[0].mxu0 %v226
    %v300 = vpop.f32.mrb[0].mxu0
    %v301 = vadd.f32 0.0, %v300
    %v302 = vpop.f32.mrb[0].mxu0
    %303 = vmatprep.mubr.f32.mxu0 0.0
    %304 = vmatmul.mubr.f32.gmra.mrb[0].mxu0 %v228
    %v305 = vpop.f32.mrb[0].mxu0
    %v306 = vadd.f32 0.0, %v305
    %v307 = vpop.f32.mrb[0].mxu0
    %308 = vdwg.mxu0
    %309 = vrot.lane.b32.xlu0 %v185, 112
    %v310 = vpop.permute.xlu0 %309
    %311 = vrot.lane.b32.xlu0 %v190, 112
    %v312 = vpop.permute.xlu0 %311
    %315 = vrot.lane.b32.xlu0 %v205, 112
    %v316 = vpop.permute.xlu0 %315
    %317 = vrot.lane.b32.xlu0 %v210, 112
    %v318 = vpop.permute.xlu0 %317
    %v319 = vsel %vm225, %v310, 0
    %v321 = vsel %vm225, %v312, 0
    %v323 = vsel %vm225, %v316, 0
    %v325 = vsel %vm225, %v318, 0
    %327 = vmatprep.subr.mxu0 0.0
    %328 = vmatpush1.xpose.msra.mxu0 %v323
    %329 = vmatprep.subr.mxu0 0.0
    %330 = vmatpush1.xpose.msra.mxu0 %v325
    %331 = vmatprep.subr.mxu0 0.0
    %332 = vmatpush1.xpose.msra.mxu0 0.0
    %333 = vmatprep.subr.mxu0 0.0
    %334 = vmatpush1.xpose.msra.mxu0 0.0
    %335 = vmatprep.subr.mxu0 0.0
    %336 = vmatpush1.xpose.msra.mxu0 0.0
    %337 = vmatprep.subr.mxu0 0.0
    %338 = vmatpush1.xpose.msra.mxu0 0.0
    %339 = vmatprep.subr.mxu0 0.0
    %340 = vmatpush1.xpose.msra.mxu0 0.0
    %341 = vmatprep.subr.mxu0 0.0
    %342 = vmatpush1.xpose.msra.mxu0 0.0
    %343 = vmatprep.subr.mxu0 0.0
    %344 = vmatpush1.xpose.msra.mxu0 0.0
    %345 = vmatprep.subr.mxu0 0.0
    %346 = vmatpush1.xpose.msra.mxu0 0.0
    %347 = vmatprep.subr.mxu0 0.0
    %348 = vmatpush1.xpose.msra.mxu0 0.0
    %349 = vmatprep.subr.mxu0 0.0
    %350 = vmatpush1.xpose.msra.mxu0 0.0
    %351 = vmatprep.subr.mxu0 0.0
    %352 = vmatpush1.xpose.msra.mxu0 0.0
    %353 = vmatprep.subr.mxu0 0.0
    %354 = vmatpush1.xpose.msra.mxu0 0.0
    %355 = vmatprep.subr.mxu0 0.0
    %356 = vmatpush1.xpose.msra.mxu0 0.0
    %357 = vmatprep.subr.mxu0 0.0
    %358 = vmatpush1.xpose.msra.mxu0 0.0
    %359 = vmatprep.subr.mxu0 0.0
    %360 = vmatpush1.xpose.msra.mxu0 0.0
    %361 = vmatprep.subr.mxu0 0.0
    %362 = vmatpush1.xpose.msra.mxu0 0.0
    %363 = vmatprep.subr.mxu0 0.0
    %364 = vmatpush1.xpose.msra.mxu0 0.0
    %365 = vmatprep.subr.mxu0 0.0
    %366 = vmatpush1.xpose.msra.mxu0 0.0
    %367 = vmatprep.subr.mxu0 0.0
    %368 = vmatpush1.xpose.msra.mxu0 0.0
    %369 = vmatprep.subr.mxu0 0.0
    %370 = vmatpush1.xpose.msra.mxu0 0.0
    %371 = vmatprep.subr.mxu0 0.0
    %372 = vmatpush1.xpose.msra.mxu0 0.0
    %373 = vmatprep.subr.mxu0 0.0
    %374 = vmatpush1.xpose.msra.mxu0 0.0
    %375 = vmatprep.subr.mxu0 0.0
    %376 = vmatpush1.xpose.msra.mxu0 0.0
    %377 = vmatprep.subr.mxu0 0.0
    %378 = vmatpush1.xpose.msra.mxu0 0.0
    %379 = vmatprep.subr.mxu0 0.0
    %380 = vmatpush1.xpose.msra.mxu0 0.0
    %381 = vmatprep.subr.mxu0 0.0
    %382 = vmatpush1.xpose.msra.mxu0 0.0
    %383 = vmatprep.subr.mxu0 0.0
    %384 = vmatpush1.xpose.msra.mxu0 0.0
    %385 = vmatprep.subr.mxu0 0.0
    %386 = vmatpush1.xpose.msra.mxu0 0.0
    %387 = vmatprep.subr.mxu0 0.0
    %388 = vmatpush1.xpose.msra.mxu0 0.0
    %389 = vmatprep.subr.mxu0 0.0
    %390 = vmatpush1.xpose.msra.mxu0 0.0
    %391 = vmatprep.mubr.f32.mxu0 0.0
    %392 = vmatmul.mubr.f32.gmra.mrb[0].mxu0 %v319
    %v393 = vpop.f32.mrb[0].mxu0
    %v394 = vadd.f32 0.0, %v393
    %v395 = vpop.f32.mrb[0].mxu0
    %396 = vmatprep.mubr.f32.mxu0 0.0
    %397 = vmatmul.mubr.f32.gmra.mrb[0].mxu0 %v321
    %v398 = vpop.f32.mrb[0].mxu0
    %v399 = vadd.f32 0.0, %v398
    %v400 = vpop.f32.mrb[0].mxu0
    %401 = vdwg.mxu0
    %v402 = vsel %vm225, %v195, 0
    %v404 = vsel %vm225, %v200, 0
    %v406 = vsel %vm225, %v205, 0
    %v408 = vsel %vm225, %v210, 0
    %410 = vmatprep.subr.mxu0 0.0
    %411 = vmatpush1.xpose.msra.mxu0 %v406
    %412 = vmatprep.subr.mxu0 0.0
    %413 = vmatpush1.xpose.msra.mxu0 %v408
    %414 = vmatprep.subr.mxu0 0.0
    %415 = vmatpush1.xpose.msra.mxu0 0.0
    %416 = vmatprep.subr.mxu0 0.0
    %417 = vmatpush1.xpose.msra.mxu0 0.0
    %418 = vmatprep.subr.mxu0 0.0
    %419 = vmatpush1.xpose.msra.mxu0 0.0
    %420 = vmatprep.subr.mxu0 0.0
    %421 = vmatpush1.xpose.msra.mxu0 0.0
    %422 = vmatprep.subr.mxu0 0.0
    %423 = vmatpush1.xpose.msra.mxu0 0.0
    %424 = vmatprep.subr.mxu0 0.0
    %425 = vmatpush1.xpose.msra.mxu0 0.0
    %426 = vmatprep.subr.mxu0 0.0
    %427 = vmatpush1.xpose.msra.mxu0 0.0
    %428 = vmatprep.subr.mxu0 0.0
    %429 = vmatpush1.xpose.msra.mxu0 0.0
    %430 = vmatprep.subr.mxu0 0.0
    %431 = vmatpush1.xpose.msra.mxu0 0.0
    %432 = vmatprep.subr.mxu0 0.0
    %433 = vmatpush1.xpose.msra.mxu0 0.0
    %434 = vmatprep.subr.mxu0 0.0
    %435 = vmatpush1.xpose.msra.mxu0 0.0
    %436 = vmatprep.subr.mxu0 0.0
    %437 = vmatpush1.xpose.msra.mxu0 0.0
    %438 = vmatprep.subr.mxu0 0.0
    %439 = vmatpush1.xpose.msra.mxu0 0.0
    %440 = vmatprep.subr.mxu0 0.0
    %441 = vmatpush1.xpose.msra.mxu0 0.0
    %442 = vmatprep.subr.mxu0 0.0
    %443 = vmatpush1.xpose.msra.mxu0 0.0
    %444 = vmatprep.subr.mxu0 0.0
    %445 = vmatpush1.xpose.msra.mxu0 0.0
    %446 = vmatprep.subr.mxu0 0.0
    %447 = vmatpush1.xpose.msra.mxu0 0.0
    %448 = vmatprep.subr.mxu0 0.0
    %449 = vmatpush1.xpose.msra.mxu0 0.0
    %450 = vmatprep.subr.mxu0 0.0
    %451 = vmatpush1.xpose.msra.mxu0 0.0
    %452 = vmatprep.subr.mxu0 0.0
    %453 = vmatpush1.xpose.msra.mxu0 0.0
    %454 = vmatprep.subr.mxu0 0.0
    %455 = vmatpush1.xpose.msra.mxu0 0.0
    %456 = vmatprep.subr.mxu0 0.0
    %457 = vmatpush1.xpose.msra.mxu0 0.0
    %458 = vmatprep.subr.mxu0 0.0
    %459 = vmatpush1.xpose.msra.mxu0 0.0
    %460 = vmatprep.subr.mxu0 0.0
    %461 = vmatpush1.xpose.msra.mxu0 0.0
    %462 = vmatprep.subr.mxu0 0.0
    %463 = vmatpush1.xpose.msra.mxu0 0.0
    %464 = vmatprep.subr.mxu0 0.0
    %465 = vmatpush1.xpose.msra.mxu0 0.0
    %466 = vmatprep.subr.mxu0 0.0
    %467 = vmatpush1.xpose.msra.mxu0 0.0
    %468 = vmatprep.subr.mxu0 0.0
    %469 = vmatpush1.xpose.msra.mxu0 0.0
    %470 = vmatprep.subr.mxu0 0.0
    %471 = vmatpush1.xpose.msra.mxu0 0.0
    %472 = vmatprep.subr.mxu0 0.0
    %473 = vmatpush1.xpose.msra.mxu0 0.0
    %474 = vmatprep.mubr.f32.mxu0 0.0
    %475 = vmatmul.mubr.f32.gmra.mrb[0].mxu0 %v402
    %v476 = vpop.f32.mrb[0].mxu0
    %v477 = vadd.f32 0.0, %v476
    %v478 = vpop.f32.mrb[0].mxu0
    %479 = vmatprep.mubr.f32.mxu0 0.0
    %480 = vmatmul.mubr.f32.gmra.mrb[0].mxu0 %v404
    %v481 = vpop.f32.mrb[0].mxu0
    %v482 = vadd.f32 0.0, %v481
    %v483 = vpop.f32.mrb[0].mxu0
    %484 = vdwg.mxu0
    %487 = vrot.lane.b32.xlu0 %v195, 112
    %v488 = vpop.permute.xlu0 %487
    %489 = vrot.lane.b32.xlu0 %v200, 112
    %v490 = vpop.permute.xlu0 %489
    %495 = vrot.lane.b32.xlu0 %v301, 16
    %v496 = vpop.permute.xlu0 %495
    %497 = vrot.lane.b32.xlu0 %v306, 16
    %v498 = vpop.permute.xlu0 %497
    %503 = vrot.lane.b32.xlu0 %v394, 16
    %v504 = vpop.permute.xlu0 %503
    %505 = vrot.lane.b32.xlu0 %v399, 16
    %v506 = vpop.permute.xlu0 %505
    %511 = vrot.lane.b32.xlu0 %v477, 16
    %v512 = vpop.permute.xlu0 %511
    %513 = vrot.lane.b32.xlu0 %v482, 16
    %v514 = vpop.permute.xlu0 %513
    %v517 = vmul.f32 %v185, 27.725887
    %v518 = vmul.f32 %v190, 27.725887
    %v519 = vmul.f32 %v310, 27.725887
    %v520 = vmul.f32 %v312, 27.725887
    %v521 = vmul.f32 %v488, 27.725887
    %v522 = vmul.f32 %v490, 27.725887
    %v523 = vmul.f32 %v496, 27.725887
    %v524 = vmul.f32 %v498, 27.725887
    %v525 = vmul.f32 %v504, 27.725887
    %v526 = vmul.f32 %v506, 27.725887
    %v527 = vmul.f32 %v512, 27.725887
    %v528 = vmul.f32 %v514, 27.725887
    %vm529 = vcmask 261248
    %v530 = vsel %vm529, %v517, -inf
    %531 = vmax.xlane.f32.xlu0 %v530
    %v532 = vpop.xlane.xlu0 %531
    %v533 = vsel %vm529, %v518, -inf
    %534 = vmax.xlane.f32.xlu0 %v533
    %v535 = vpop.xlane.xlu0 %534
    %v536 = vsel %vm529, %v519, -inf
    %537 = vmax.xlane.f32.xlu0 %v536
    %v538 = vpop.xlane.xlu0 %537
    %v539 = vsel %vm529, %v520, -inf
    %540 = vmax.xlane.f32.xlu0 %v539
    %v541 = vpop.xlane.xlu0 %540
    %v542 = vsel %vm529, %v521, -inf
    %543 = vmax.xlane.f32.xlu0 %v542
    %v544 = vpop.xlane.xlu0 %543
    %v545 = vsel %vm529, %v522, -inf
    %546 = vmax.xlane.f32.xlu0 %v545
    %v547 = vpop.xlane.xlu0 %546
    %v548 = vsel %vm529, %v523, -inf
    %549 = vmax.xlane.f32.xlu0 %v548
    %v550 = vpop.xlane.xlu0 %549
    %v551 = vsel %vm529, %v524, -inf
    %552 = vmax.xlane.f32.xlu0 %v551
    %v553 = vpop.xlane.xlu0 %552
    %v554 = vsel %vm529, %v525, -inf
    %555 = vmax.xlane.f32.xlu0 %v554
    %v556 = vpop.xlane.xlu0 %555
    %v557 = vsel %vm529, %v526, -inf
    %558 = vmax.xlane.f32.xlu0 %v557
    %v559 = vpop.xlane.xlu0 %558
    %v560 = vsel %vm529, %v527, -inf
    %561 = vmax.xlane.f32.xlu0 %v560
    %v562 = vpop.xlane.xlu0 %561
    %v563 = vsel %vm529, %v528, -inf
    %564 = vmax.xlane.f32.xlu0 %v563
    %v565 = vpop.xlane.xlu0 %564
    %v566 = vmax.f32 %v532, %v535
    %v567 = vrot.slane %v566, 4
    %v568 = vmax.f32 %v566, %v567
    %v569 = vrot.slane %v568, 2
    %v570 = vmax.f32 %v568, %v569
    %v571 = vrot.slane %v570, 1
    %v572 = vmax.f32 %v570, %v571
    %v573 = vmax.f32 %v538, %v541
    %v574 = vrot.slane %v573, 4
    %v575 = vmax.f32 %v573, %v574
    %v576 = vrot.slane %v575, 2
    %v577 = vmax.f32 %v575, %v576
    %v578 = vrot.slane %v577, 1
    %v579 = vmax.f32 %v577, %v578
    %v580 = vmax.f32 %v544, %v547
    %v581 = vrot.slane %v580, 4
    %v582 = vmax.f32 %v580, %v581
    %v583 = vrot.slane %v582, 2
    %v584 = vmax.f32 %v582, %v583
    %v585 = vrot.slane %v584, 1
    %v586 = vmax.f32 %v584, %v585
    %v587 = vmax.f32 %v550, %v553
    %v588 = vrot.slane %v587, 4
    %v589 = vmax.f32 %v587, %v588
    %v590 = vrot.slane %v589, 2
    %v591 = vmax.f32 %v589, %v590
    %v592 = vrot.slane %v591, 1
    %v593 = vmax.f32 %v591, %v592
    %v594 = vmax.f32 %v556, %v559
    %v595 = vrot.slane %v594, 4
    %v596 = vmax.f32 %v594, %v595
    %v597 = vrot.slane %v596, 2
    %v598 = vmax.f32 %v596, %v597
    %v599 = vrot.slane %v598, 1
    %v600 = vmax.f32 %v598, %v599
    %v601 = vmax.f32 %v562, %v565
    %v602 = vrot.slane %v601, 4
    %v603 = vmax.f32 %v601, %v602
    %v604 = vrot.slane %v603, 2
    %v605 = vmax.f32 %v603, %v604
    %v606 = vrot.slane %v605, 1
    %v607 = vmax.f32 %v605, %v606
    %v608 = vsub.f32 %v517, %v572
    %v609 = vsub.f32 %v518, %v572
    %v610 = vsub.f32 %v519, %v579
    %v611 = vsub.f32 %v520, %v579
    %v612 = vsub.f32 %v521, %v586
    %v613 = vsub.f32 %v522, %v586
    %v614 = vsub.f32 %v523, %v593
    %v615 = vsub.f32 %v524, %v593
    %v616 = vsub.f32 %v525, %v600
    %v617 = vsub.f32 %v526, %v600
    %v618 = vsub.f32 %v527, %v607
    %v619 = vsub.f32 %v528, %v607
    %v620 = vmul.f32 %v608, 1.442695
    %v621 = vpow.pop %v620
    %v622 = vmul.f32 %v609, 1.442695
    %v623 = vpow.pop %v622
    %v624 = vmul.f32 %v610, 1.442695
    %v625 = vpow.pop %v624
    %v626 = vmul.f32 %v611, 1.442695
    %v627 = vpow.pop %v626
    %v628 = vmul.f32 %v612, 1.442695
    %v629 = vpow.pop %v628
    %v630 = vmul.f32 %v613, 1.442695
    %v631 = vpow.pop %v630
    %v632 = vmul.f32 %v614, 1.442695
    %v633 = vpow.pop %v632
    %v634 = vmul.f32 %v615, 1.442695
    %v635 = vpow.pop %v634
    %v636 = vmul.f32 %v616, 1.442695
    %v637 = vpow.pop %v636
    %v638 = vmul.f32 %v617, 1.442695
    %v639 = vpow.pop %v638
    %v640 = vmul.f32 %v618, 1.442695
    %v641 = vpow.pop %v640
    %v642 = vmul.f32 %v619, 1.442695
    %v643 = vpow.pop %v642
    %656 = vrot.lane.b32.xlu0 %v621, 112
    %v657 = vpop.permute.xlu0 %656
    %658 = vrot.lane.b32.xlu0 %v623, 112
    %v659 = vpop.permute.xlu0 %658
    %660 = vrot.lane.b32.xlu0 %v625, 112
    %v661 = vpop.permute.xlu0 %660
    %662 = vrot.lane.b32.xlu0 %v627, 112
    %v663 = vpop.permute.xlu0 %662
    %664 = vrot.lane.b32.xlu0 %v629, 112
    %v665 = vpop.permute.xlu0 %664
    %666 = vrot.lane.b32.xlu0 %v631, 112
    %v667 = vpop.permute.xlu0 %666
    %668 = vrot.lane.b32.xlu0 %v633, 112
    %v669 = vpop.permute.xlu0 %668
    %670 = vrot.lane.b32.xlu0 %v635, 112
    %v671 = vpop.permute.xlu0 %670
    %672 = vrot.lane.b32.xlu0 %v637, 112
    %v673 = vpop.permute.xlu0 %672
    %674 = vrot.lane.b32.xlu0 %v639, 112
    %v675 = vpop.permute.xlu0 %674
    %676 = vrot.lane.b32.xlu0 %v641, 112
    %v677 = vpop.permute.xlu0 %676
    %678 = vrot.lane.b32.xlu0 %v643, 112
    %v679 = vpop.permute.xlu0 %678
    %v692 = vsel %vm225, %v657, 0.0
    %693 = vadd.xlane.f32.xlu0 %v692
    %v694 = vpop.xlane.xlu0 %693
    %v695 = vsel %vm225, %v659, 0.0
    %696 = vadd.xlane.f32.xlu0 %v695
    %v697 = vpop.xlane.xlu0 %696
    %v698 = vsel %vm225, %v661, 0.0
    %699 = vadd.xlane.f32.xlu0 %v698
    %v700 = vpop.xlane.xlu0 %699
    %v701 = vsel %vm225, %v663, 0.0
    %702 = vadd.xlane.f32.xlu0 %v701
    %v703 = vpop.xlane.xlu0 %702
    %v704 = vsel %vm225, %v665, 0.0
    %705 = vadd.xlane.f32.xlu0 %v704
    %v706 = vpop.xlane.xlu0 %705
    %v707 = vsel %vm225, %v667, 0.0
    %708 = vadd.xlane.f32.xlu0 %v707
    %v709 = vpop.xlane.xlu0 %708
    %v710 = vsel %vm225, %v669, 0.0
    %711 = vadd.xlane.f32.xlu0 %v710
    %v712 = vpop.xlane.xlu0 %711
    %v713 = vsel %vm225, %v671, 0.0
    %714 = vadd.xlane.f32.xlu0 %v713
    %v715 = vpop.xlane.xlu0 %714
    %v716 = vsel %vm225, %v673, 0.0
    %717 = vadd.xlane.f32.xlu0 %v716
    %v718 = vpop.xlane.xlu0 %717
    %v719 = vsel %vm225, %v675, 0.0
    %720 = vadd.xlane.f32.xlu0 %v719
    %v721 = vpop.xlane.xlu0 %720
    %v722 = vsel %vm225, %v677, 0.0
    %723 = vadd.xlane.f32.xlu0 %v722
    %v724 = vpop.xlane.xlu0 %723
    %v725 = vsel %vm225, %v679, 0.0
    %726 = vadd.xlane.f32.xlu0 %v725
    %v727 = vpop.xlane.xlu0 %726
    %v728 = vrcp.pop %v694
    %v729 = vrcp.pop %v697
    %v730 = vrcp.pop %v700
    %v731 = vrcp.pop %v703
    %v732 = vrcp.pop %v706
    %v733 = vrcp.pop %v709
    %v734 = vrcp.pop %v712
    %v735 = vrcp.pop %v715
    %v736 = vrcp.pop %v718
    %v737 = vrcp.pop %v721
    %v738 = vrcp.pop %v724
    %v739 = vrcp.pop %v727
    %v740 = vsel %vm529, %v621, 0.0
    %v741 = vsel %vm529, %v623, 0.0
    %v742 = vadd.f32 %v740, %v741
    %v743 = vrot.slane %v742, 4
    %v744 = vadd.f32 %v742, %v743
    %v745 = vrot.slane %v744, 2
    %v746 = vadd.f32 %v744, %v745
    %v747 = vrot.slane %v746, 1
    %v748 = vadd.f32 %v746, %v747
    %v749 = vsel %vm529, %v625, 0.0
    %v750 = vsel %vm529, %v627, 0.0
    %v751 = vadd.f32 %v749, %v750
    %v752 = vrot.slane %v751, 4
    %v753 = vadd.f32 %v751, %v752
    %v754 = vrot.slane %v753, 2
    %v755 = vadd.f32 %v753, %v754
    %v756 = vrot.slane %v755, 1
    %v757 = vadd.f32 %v755, %v756
    %v758 = vsel %vm529, %v629, 0.0
    %v759 = vsel %vm529, %v631, 0.0
    %v760 = vadd.f32 %v758, %v759
    %v761 = vrot.slane %v760, 4
    %v762 = vadd.f32 %v760, %v761
    %v763 = vrot.slane %v762, 2
    %v764 = vadd.f32 %v762, %v763
    %v765 = vrot.slane %v764, 1
    %v766 = vadd.f32 %v764, %v765
    %v767 = vsel %vm529, %v633, 0.0
    %v768 = vsel %vm529, %v635, 0.0
    %v769 = vadd.f32 %v767, %v768
    %v770 = vrot.slane %v769, 4
    %v771 = vadd.f32 %v769, %v770
    %v772 = vrot.slane %v771, 2
    %v773 = vadd.f32 %v771, %v772
    %v774 = vrot.slane %v773, 1
    %v775 = vadd.f32 %v773, %v774
    %v776 = vsel %vm529, %v637, 0.0
    %v777 = vsel %vm529, %v639, 0.0
    %v778 = vadd.f32 %v776, %v777
    %v779 = vrot.slane %v778, 4
    %v780 = vadd.f32 %v778, %v779
    %v781 = vrot.slane %v780, 2
    %v782 = vadd.f32 %v780, %v781
    %v783 = vrot.slane %v782, 1
    %v784 = vadd.f32 %v782, %v783
    %v785 = vsel %vm529, %v641, 0.0
    %v786 = vsel %vm529, %v643, 0.0
    %v787 = vadd.f32 %v785, %v786
    %v788 = vrot.slane %v787, 4
    %v789 = vadd.f32 %v787, %v788
    %v790 = vrot.slane %v789, 2
    %v791 = vadd.f32 %v789, %v790
    %v792 = vrot.slane %v791, 1
    %v793 = vadd.f32 %v791, %v792
    %v794 = vrcp.pop %v748
    %v795 = vrcp.pop %v757
    %v796 = vrcp.pop %v766
    %v797 = vrcp.pop %v775
    %v798 = vrcp.pop %v784
    %v799 = vrcp.pop %v793
    %v800 = vmul.f32 %v621, %v728
    %v801 = vmul.f32 %v623, %v729
    %v802 = vmul.f32 %v625, %v730
    %v803 = vmul.f32 %v627, %v731
    %v804 = vmul.f32 %v629, %v732
    %v805 = vmul.f32 %v631, %v733
    %v806 = vmul.f32 %v633, %v734
    %v807 = vmul.f32 %v635, %v735
    %v808 = vmul.f32 %v637, %v736
    %v809 = vmul.f32 %v639, %v737
    %v810 = vmul.f32 %v641, %v738
    %v811 = vmul.f32 %v643, %v739
    %v812 = vmul.f32 %v621, %v794
    %v813 = vmul.f32 %v623, %v794
    %v814 = vmul.f32 %v625, %v795
    %v815 = vmul.f32 %v627, %v795
    %v816 = vmul.f32 %v629, %v796
    %v817 = vmul.f32 %v631, %v796
    %v818 = vmul.f32 %v633, %v797
    %v819 = vmul.f32 %v635, %v797
    %v820 = vmul.f32 %v637, %v798
    %v821 = vmul.f32 %v639, %v798
    %v822 = vmul.f32 %v641, %v799
    %v823 = vmul.f32 %v643, %v799
    %826 = vrot.lane.b32.xlu0 %v800, 112
    %v827 = vpop.permute.xlu0 %826
    %828 = vrot.lane.b32.xlu0 %v801, 112
    %v829 = vpop.permute.xlu0 %828
    %832 = vrot.lane.b32.xlu0 %v812, 112
    %v833 = vpop.permute.xlu0 %832
    %834 = vrot.lane.b32.xlu0 %v813, 112
    %v835 = vpop.permute.xlu0 %834
    %v836 = vsel %vm225, %v827, 0
    %v838 = vsel %vm225, %v829, 0
    %v840 = vsel %vm225, %v833, 0
    %v842 = vsel %vm225, %v835, 0
    %844 = vmatprep.subr.mxu0 0.0
    %845 = vmatpush1.xpose.msra.mxu0 %v840
    %846 = vmatprep.subr.mxu0 0.0
    %847 = vmatpush1.xpose.msra.mxu0 %v842
    %848 = vmatprep.subr.mxu0 0.0
    %849 = vmatpush1.xpose.msra.mxu0 0.0
    %850 = vmatprep.subr.mxu0 0.0
    %851 = vmatpush1.xpose.msra.mxu0 0.0
    %852 = vmatprep.subr.mxu0 0.0
    %853 = vmatpush1.xpose.msra.mxu0 0.0
    %854 = vmatprep.subr.mxu0 0.0
    %855 = vmatpush1.xpose.msra.mxu0 0.0
    %856 = vmatprep.subr.mxu0 0.0
    %857 = vmatpush1.xpose.msra.mxu0 0.0
    %858 = vmatprep.subr.mxu0 0.0
    %859 = vmatpush1.xpose.msra.mxu0 0.0
    %860 = vmatprep.subr.mxu0 0.0
    %861 = vmatpush1.xpose.msra.mxu0 0.0
    %862 = vmatprep.subr.mxu0 0.0
    %863 = vmatpush1.xpose.msra.mxu0 0.0
    %864 = vmatprep.subr.mxu0 0.0
    %865 = vmatpush1.xpose.msra.mxu0 0.0
    %866 = vmatprep.subr.mxu0 0.0
    %867 = vmatpush1.xpose.msra.mxu0 0.0
    %868 = vmatprep.subr.mxu0 0.0
    %869 = vmatpush1.xpose.msra.mxu0 0.0
    %870 = vmatprep.subr.mxu0 0.0
    %871 = vmatpush1.xpose.msra.mxu0 0.0
    %872 = vmatprep.subr.mxu0 0.0
    %873 = vmatpush1.xpose.msra.mxu0 0.0
    %874 = vmatprep.subr.mxu0 0.0
    %875 = vmatpush1.xpose.msra.mxu0 0.0
    %876 = vmatprep.subr.mxu0 0.0
    %877 = vmatpush1.xpose.msra.mxu0 0.0
    %878 = vmatprep.subr.mxu0 0.0
    %879 = vmatpush1.xpose.msra.mxu0 0.0
    %880 = vmatprep.subr.mxu0 0.0
    %881 = vmatpush1.xpose.msra.mxu0 0.0
    %882 = vmatprep.subr.mxu0 0.0
    %883 = vmatpush1.xpose.msra.mxu0 0.0
    %884 = vmatprep.subr.mxu0 0.0
    %885 = vmatpush1.xpose.msra.mxu0 0.0
    %886 = vmatprep.subr.mxu0 0.0
    %887 = vmatpush1.xpose.msra.mxu0 0.0
    %888 = vmatprep.subr.mxu0 0.0
    %889 = vmatpush1.xpose.msra.mxu0 0.0
    %890 = vmatprep.subr.mxu0 0.0
    %891 = vmatpush1.xpose.msra.mxu0 0.0
    %892 = vmatprep.subr.mxu0 0.0
    %893 = vmatpush1.xpose.msra.mxu0 0.0
    %894 = vmatprep.subr.mxu0 0.0
    %895 = vmatpush1.xpose.msra.mxu0 0.0
    %896 = vmatprep.subr.mxu0 0.0
    %897 = vmatpush1.xpose.msra.mxu0 0.0
    %898 = vmatprep.subr.mxu0 0.0
    %899 = vmatpush1.xpose.msra.mxu0 0.0
    %900 = vmatprep.subr.mxu0 0.0
    %901 = vmatpush1.xpose.msra.mxu0 0.0
    %902 = vmatprep.subr.mxu0 0.0
    %903 = vmatpush1.xpose.msra.mxu0 0.0
    %904 = vmatprep.subr.mxu0 0.0
    %905 = vmatpush1.xpose.msra.mxu0 0.0
    %906 = vmatprep.subr.mxu0 0.0
    %907 = vmatpush1.xpose.msra.mxu0 0.0
    %908 = vmatprep.mubr.f32.mxu0 0.0
    %909 = vmatmul.mubr.f32.gmra.mrb[0].mxu0 %v836
    %v910 = vpop.f32.mrb[0].mxu0
    %v911 = vadd.f32 0.0, %v910
    %v912 = vpop.f32.mrb[0].mxu0
    %913 = vmatprep.mubr.f32.mxu0 0.0
    %914 = vmatmul.mubr.f32.gmra.mrb[0].mxu0 %v838
    %v915 = vpop.f32.mrb[0].mxu0
    %v916 = vadd.f32 0.0, %v915
    %v917 = vpop.f32.mrb[0].mxu0
    %918 = vdwg.mxu0
    %921 = vrot.lane.b32.xlu0 %v802, 112
    %v922 = vpop.permute.xlu0 %921
    %923 = vrot.lane.b32.xlu0 %v803, 112
    %v924 = vpop.permute.xlu0 %923
    %927 = vrot.lane.b32.xlu0 %v814, 112
    %v928 = vpop.permute.xlu0 %927
    %929 = vrot.lane.b32.xlu0 %v815, 112
    %v930 = vpop.permute.xlu0 %929
    %v931 = vsel %vm225, %v922, 0
    %v933 = vsel %vm225, %v924, 0
    %v935 = vsel %vm225, %v928, 0
    %v937 = vsel %vm225, %v930, 0
    %939 = vmatprep.subr.mxu0 0.0
    %940 = vmatpush1.xpose.msra.mxu0 %v935
    %941 = vmatprep.subr.mxu0 0.0
    %942 = vmatpush1.xpose.msra.mxu0 %v937
    %943 = vmatprep.subr.mxu0 0.0
    %944 = vmatpush1.xpose.msra.mxu0 0.0
    %945 = vmatprep.subr.mxu0 0.0
    %946 = vmatpush1.xpose.msra.mxu0 0.0
    %947 = vmatprep.subr.mxu0 0.0
    %948 = vmatpush1.xpose.msra.mxu0 0.0
    %949 = vmatprep.subr.mxu0 0.0
    %950 = vmatpush1.xpose.msra.mxu0 0.0
    %951 = vmatprep.subr.mxu0 0.0
    %952 = vmatpush1.xpose.msra.mxu0 0.0
    %953 = vmatprep.subr.mxu0 0.0
    %954 = vmatpush1.xpose.msra.mxu0 0.0
    %955 = vmatprep.subr.mxu0 0.0
    %956 = vmatpush1.xpose.msra.mxu0 0.0
    %957 = vmatprep.subr.mxu0 0.0
    %958 = vmatpush1.xpose.msra.mxu0 0.0
    %959 = vmatprep.subr.mxu0 0.0
    %960 = vmatpush1.xpose.msra.mxu0 0.0
    %961 = vmatprep.subr.mxu0 0.0
    %962 = vmatpush1.xpose.msra.mxu0 0.0
    %963 = vmatprep.subr.mxu0 0.0
    %964 = vmatpush1.xpose.msra.mxu0 0.0
    %965 = vmatprep.subr.mxu0 0.0
    %966 = vmatpush1.xpose.msra.mxu0 0.0
    %967 = vmatprep.subr.mxu0 0.0
    %968 = vmatpush1.xpose.msra.mxu0 0.0
    %969 = vmatprep.subr.mxu0 0.0
    %970 = vmatpush1.xpose.msra.mxu0 0.0
    %971 = vmatprep.subr.mxu0 0.0
    %972 = vmatpush1.xpose.msra.mxu0 0.0
    %973 = vmatprep.subr.mxu0 0.0
    %974 = vmatpush1.xpose.msra.mxu0 0.0
    %975 = vmatprep.subr.mxu0 0.0
    %976 = vmatpush1.xpose.msra.mxu0 0.0
    %977 = vmatprep.subr.mxu0 0.0
    %978 = vmatpush1.xpose.msra.mxu0 0.0
    %979 = vmatprep.subr.mxu0 0.0
    %980 = vmatpush1.xpose.msra.mxu0 0.0
    %981 = vmatprep.subr.mxu0 0.0
    %982 = vmatpush1.xpose.msra.mxu0 0.0
    %983 = vmatprep.subr.mxu0 0.0
    %984 = vmatpush1.xpose.msra.mxu0 0.0
    %985 = vmatprep.subr.mxu0 0.0
    %986 = vmatpush1.xpose.msra.mxu0 0.0
    %987 = vmatprep.subr.mxu0 0.0
    %988 = vmatpush1.xpose.msra.mxu0 0.0
    %989 = vmatprep.subr.mxu0 0.0
    %990 = vmatpush1.xpose.msra.mxu0 0.0
    %991 = vmatprep.subr.mxu0 0.0
    %992 = vmatpush1.xpose.msra.mxu0 0.0
    %993 = vmatprep.subr.mxu0 0.0
    %994 = vmatpush1.xpose.msra.mxu0 0.0
    %995 = vmatprep.subr.mxu0 0.0
    %996 = vmatpush1.xpose.msra.mxu0 0.0
    %997 = vmatprep.subr.mxu0 0.0
    %998 = vmatpush1.xpose.msra.mxu0 0.0
    %999 = vmatprep.subr.mxu0 0.0
    %1000 = vmatpush1.xpose.msra.mxu0 0.0
    %1001 = vmatprep.subr.mxu0 0.0
    %1002 = vmatpush1.xpose.msra.mxu0 0.0
    %1003 = vmatprep.mubr.f32.mxu0 0.0
    %1004 = vmatmul.mubr.f32.gmra.mrb[0].mxu0 %v931
    %v1005 = vpop.f32.mrb[0].mxu0
    %v1006 = vadd.f32 0.0, %v1005
    %v1007 = vpop.f32.mrb[0].mxu0
    %1008 = vmatprep.mubr.f32.mxu0 0.0
    %1009 = vmatmul.mubr.f32.gmra.mrb[0].mxu0 %v933
    %v1010 = vpop.f32.mrb[0].mxu0
    %v1011 = vadd.f32 0.0, %v1010
    %v1012 = vpop.f32.mrb[0].mxu0
    %1013 = vdwg.mxu0
    %1016 = vrot.lane.b32.xlu0 %v804, 112
    %v1017 = vpop.permute.xlu0 %1016
    %1018 = vrot.lane.b32.xlu0 %v805, 112
    %v1019 = vpop.permute.xlu0 %1018
    %1022 = vrot.lane.b32.xlu0 %v816, 112
    %v1023 = vpop.permute.xlu0 %1022
    %1024 = vrot.lane.b32.xlu0 %v817, 112
    %v1025 = vpop.permute.xlu0 %1024
    %v1026 = vsel %vm225, %v1017, 0
    %v1028 = vsel %vm225, %v1019, 0
    %v1030 = vsel %vm225, %v1023, 0
    %v1032 = vsel %vm225, %v1025, 0
    %1034 = vmatprep.subr.mxu0 0.0
    %1035 = vmatpush1.xpose.msra.mxu0 %v1030
    %1036 = vmatprep.subr.mxu0 0.0
    %1037 = vmatpush1.xpose.msra.mxu0 %v1032
    %1038 = vmatprep.subr.mxu0 0.0
    %1039 = vmatpush1.xpose.msra.mxu0 0.0
    %1040 = vmatprep.subr.mxu0 0.0
    %1041 = vmatpush1.xpose.msra.mxu0 0.0
    %1042 = vmatprep.subr.mxu0 0.0
    %1043 = vmatpush1.xpose.msra.mxu0 0.0
    %1044 = vmatprep.subr.mxu0 0.0
    %1045 = vmatpush1.xpose.msra.mxu0 0.0
    %1046 = vmatprep.subr.mxu0 0.0
    %1047 = vmatpush1.xpose.msra.mxu0 0.0
    %1048 = vmatprep.subr.mxu0 0.0
    %1049 = vmatpush1.xpose.msra.mxu0 0.0
    %1050 = vmatprep.subr.mxu0 0.0
    %1051 = vmatpush1.xpose.msra.mxu0 0.0
    %1052 = vmatprep.subr.mxu0 0.0
    %1053 = vmatpush1.xpose.msra.mxu0 0.0
    %1054 = vmatprep.subr.mxu0 0.0
    %1055 = vmatpush1.xpose.msra.mxu0 0.0
    %1056 = vmatprep.subr.mxu0 0.0
    %1057 = vmatpush1.xpose.msra.mxu0 0.0
    %1058 = vmatprep.subr.mxu0 0.0
    %1059 = vmatpush1.xpose.msra.mxu0 0.0
    %1060 = vmatprep.subr.mxu0 0.0
    %1061 = vmatpush1.xpose.msra.mxu0 0.0
    %1062 = vmatprep.subr.mxu0 0.0
    %1063 = vmatpush1.xpose.msra.mxu0 0.0
    %1064 = vmatprep.subr.mxu0 0.0
    %1065 = vmatpush1.xpose.msra.mxu0 0.0
    %1066 = vmatprep.subr.mxu0 0.0
    %1067 = vmatpush1.xpose.msra.mxu0 0.0
    %1068 = vmatprep.subr.mxu0 0.0
    %1069 = vmatpush1.xpose.msra.mxu0 0.0
    %1070 = vmatprep.subr.mxu0 0.0
    %1071 = vmatpush1.xpose.msra.mxu0 0.0
    %1072 = vmatprep.subr.mxu0 0.0
    %1073 = vmatpush1.xpose.msra.mxu0 0.0
    %1074 = vmatprep.subr.mxu0 0.0
    %1075 = vmatpush1.xpose.msra.mxu0 0.0
    %1076 = vmatprep.subr.mxu0 0.0
    %1077 = vmatpush1.xpose.msra.mxu0 0.0
    %1078 = vmatprep.subr.mxu0 0.0
    %1079 = vmatpush1.xpose.msra.mxu0 0.0
    %1080 = vmatprep.subr.mxu0 0.0
    %1081 = vmatpush1.xpose.msra.mxu0 0.0
    %1082 = vmatprep.subr.mxu0 0.0
    %1083 = vmatpush1.xpose.msra.mxu0 0.0
    %1084 = vmatprep.subr.mxu0 0.0
    %1085 = vmatpush1.xpose.msra.mxu0 0.0
    %1086 = vmatprep.subr.mxu0 0.0
    %1087 = vmatpush1.xpose.msra.mxu0 0.0
    %1088 = vmatprep.subr.mxu0 0.0
    %1089 = vmatpush1.xpose.msra.mxu0 0.0
    %1090 = vmatprep.subr.mxu0 0.0
    %1091 = vmatpush1.xpose.msra.mxu0 0.0
    %1092 = vmatprep.subr.mxu0 0.0
    %1093 = vmatpush1.xpose.msra.mxu0 0.0
    %1094 = vmatprep.subr.mxu0 0.0
    %1095 = vmatpush1.xpose.msra.mxu0 0.0
    %1096 = vmatprep.subr.mxu0 0.0
    %1097 = vmatpush1.xpose.msra.mxu0 0.0
    %1098 = vmatprep.mubr.f32.mxu0 0.0
    %1099 = vmatmul.mubr.f32.gmra.mrb[0].mxu0 %v1026
    %v1100 = vpop.f32.mrb[0].mxu0
    %v1101 = vadd.f32 0.0, %v1100
    %v1102 = vpop.f32.mrb[0].mxu0
    %1103 = vmatprep.mubr.f32.mxu0 0.0
    %1104 = vmatmul.mubr.f32.gmra.mrb[0].mxu0 %v1028
    %v1105 = vpop.f32.mrb[0].mxu0
    %v1106 = vadd.f32 0.0, %v1105
    %v1107 = vpop.f32.mrb[0].mxu0
    %1108 = vdwg.mxu0
    %1111 = vrot.lane.b32.xlu0 %v806, 112
    %v1112 = vpop.permute.xlu0 %1111
    %1113 = vrot.lane.b32.xlu0 %v807, 112
    %v1114 = vpop.permute.xlu0 %1113
    %1117 = vrot.lane.b32.xlu0 %v818, 112
    %v1118 = vpop.permute.xlu0 %1117
    %1119 = vrot.lane.b32.xlu0 %v819, 112
    %v1120 = vpop.permute.xlu0 %1119
    %v1121 = vsel %vm225, %v1112, 0
    %v1123 = vsel %vm225, %v1114, 0
    %v1125 = vsel %vm225, %v1118, 0
    %v1127 = vsel %vm225, %v1120, 0
    %1129 = vmatprep.subr.mxu0 0.0
    %1130 = vmatpush1.xpose.msra.mxu0 %v1125
    %1131 = vmatprep.subr.mxu0 0.0
    %1132 = vmatpush1.xpose.msra.mxu0 %v1127
    %1133 = vmatprep.subr.mxu0 0.0
    %1134 = vmatpush1.xpose.msra.mxu0 0.0
    %1135 = vmatprep.subr.mxu0 0.0
    %1136 = vmatpush1.xpose.msra.mxu0 0.0
    %1137 = vmatprep.subr.mxu0 0.0
    %1138 = vmatpush1.xpose.msra.mxu0 0.0
    %1139 = vmatprep.subr.mxu0 0.0
    %1140 = vmatpush1.xpose.msra.mxu0 0.0
    %1141 = vmatprep.subr.mxu0 0.0
    %1142 = vmatpush1.xpose.msra.mxu0 0.0
    %1143 = vmatprep.subr.mxu0 0.0
    %1144 = vmatpush1.xpose.msra.mxu0 0.0
    %1145 = vmatprep.subr.mxu0 0.0
    %1146 = vmatpush1.xpose.msra.mxu0 0.0
    %1147 = vmatprep.subr.mxu0 0.0
    %1148 = vmatpush1.xpose.msra.mxu0 0.0
    %1149 = vmatprep.subr.mxu0 0.0
    %1150 = vmatpush1.xpose.msra.mxu0 0.0
    %1151 = vmatprep.subr.mxu0 0.0
    %1152 = vmatpush1.xpose.msra.mxu0 0.0
    %1153 = vmatprep.subr.mxu0 0.0
    %1154 = vmatpush1.xpose.msra.mxu0 0.0
    %1155 = vmatprep.subr.mxu0 0.0
    %1156 = vmatpush1.xpose.msra.mxu0 0.0
    %1157 = vmatprep.subr.mxu0 0.0
    %1158 = vmatpush1.xpose.msra.mxu0 0.0
    %1159 = vmatprep.subr.mxu0 0.0
    %1160 = vmatpush1.xpose.msra.mxu0 0.0
    %1161 = vmatprep.subr.mxu0 0.0
    %1162 = vmatpush1.xpose.msra.mxu0 0.0
    %1163 = vmatprep.subr.mxu0 0.0
    %1164 = vmatpush1.xpose.msra.mxu0 0.0
    %1165 = vmatprep.subr.mxu0 0.0
    %1166 = vmatpush1.xpose.msra.mxu0 0.0
    %1167 = vmatprep.subr.mxu0 0.0
    %1168 = vmatpush1.xpose.msra.mxu0 0.0
    %1169 = vmatprep.subr.mxu0 0.0
    %1170 = vmatpush1.xpose.msra.mxu0 0.0
    %1171 = vmatprep.subr.mxu0 0.0
    %1172 = vmatpush1.xpose.msra.mxu0 0.0
    %1173 = vmatprep.subr.mxu0 0.0
    %1174 = vmatpush1.xpose.msra.mxu0 0.0
    %1175 = vmatprep.subr.mxu0 0.0
    %1176 = vmatpush1.xpose.msra.mxu0 0.0
    %1177 = vmatprep.subr.mxu0 0.0
    %1178 = vmatpush1.xpose.msra.mxu0 0.0
    %1179 = vmatprep.subr.mxu0 0.0
    %1180 = vmatpush1.xpose.msra.mxu0 0.0
    %1181 = vmatprep.subr.mxu0 0.0
    %1182 = vmatpush1.xpose.msra.mxu0 0.0
    %1183 = vmatprep.subr.mxu0 0.0
    %1184 = vmatpush1.xpose.msra.mxu0 0.0
    %1185 = vmatprep.subr.mxu0 0.0
    %1186 = vmatpush1.xpose.msra.mxu0 0.0
    %1187 = vmatprep.subr.mxu0 0.0
    %1188 = vmatpush1.xpose.msra.mxu0 0.0
    %1189 = vmatprep.subr.mxu0 0.0
    %1190 = vmatpush1.xpose.msra.mxu0 0.0
    %1191 = vmatprep.subr.mxu0 0.0
    %1192 = vmatpush1.xpose.msra.mxu0 0.0
    %1193 = vmatprep.mubr.f32.mxu0 0.0
    %1194 = vmatmul.mubr.f32.gmra.mrb[0].mxu0 %v1121
    %v1195 = vpop.f32.mrb[0].mxu0
    %v1196 = vadd.f32 0.0, %v1195
    %v1197 = vpop.f32.mrb[0].mxu0
    %1198 = vmatprep.mubr.f32.mxu0 0.0
    %1199 = vmatmul.mubr.f32.gmra.mrb[0].mxu0 %v1123
    %v1200 = vpop.f32.mrb[0].mxu0
    %v1201 = vadd.f32 0.0, %v1200
    %v1202 = vpop.f32.mrb[0].mxu0
    %1203 = vdwg.mxu0
    %1206 = vrot.lane.b32.xlu0 %v808, 112
    %v1207 = vpop.permute.xlu0 %1206
    %1208 = vrot.lane.b32.xlu0 %v809, 112
    %v1209 = vpop.permute.xlu0 %1208
    %1212 = vrot.lane.b32.xlu0 %v820, 112
    %v1213 = vpop.permute.xlu0 %1212
    %1214 = vrot.lane.b32.xlu0 %v821, 112
    %v1215 = vpop.permute.xlu0 %1214
    %v1216 = vsel %vm225, %v1207, 0
    %v1218 = vsel %vm225, %v1209, 0
    %v1220 = vsel %vm225, %v1213, 0
    %v1222 = vsel %vm225, %v1215, 0
    %1224 = vmatprep.subr.mxu0 0.0
    %1225 = vmatpush1.xpose.msra.mxu0 %v1220
    %1226 = vmatprep.subr.mxu0 0.0
    %1227 = vmatpush1.xpose.msra.mxu0 %v1222
    %1228 = vmatprep.subr.mxu0 0.0
    %1229 = vmatpush1.xpose.msra.mxu0 0.0
    %1230 = vmatprep.subr.mxu0 0.0
    %1231 = vmatpush1.xpose.msra.mxu0 0.0
    %1232 = vmatprep.subr.mxu0 0.0
    %1233 = vmatpush1.xpose.msra.mxu0 0.0
    %1234 = vmatprep.subr.mxu0 0.0
    %1235 = vmatpush1.xpose.msra.mxu0 0.0
    %1236 = vmatprep.subr.mxu0 0.0
    %1237 = vmatpush1.xpose.msra.mxu0 0.0
    %1238 = vmatprep.subr.mxu0 0.0
    %1239 = vmatpush1.xpose.msra.mxu0 0.0
    %1240 = vmatprep.subr.mxu0 0.0
    %1241 = vmatpush1.xpose.msra.mxu0 0.0
    %1242 = vmatprep.subr.mxu0 0.0
    %1243 = vmatpush1.xpose.msra.mxu0 0.0
    %1244 = vmatprep.subr.mxu0 0.0
    %1245 = vmatpush1.xpose.msra.mxu0 0.0
    %1246 = vmatprep.subr.mxu0 0.0
    %1247 = vmatpush1.xpose.msra.mxu0 0.0
    %1248 = vmatprep.subr.mxu0 0.0
    %1249 = vmatpush1.xpose.msra.mxu0 0.0
    %1250 = vmatprep.subr.mxu0 0.0
    %1251 = vmatpush1.xpose.msra.mxu0 0.0
    %1252 = vmatprep.subr.mxu0 0.0
    %1253 = vmatpush1.xpose.msra.mxu0 0.0
    %1254 = vmatprep.subr.mxu0 0.0
    %1255 = vmatpush1.xpose.msra.mxu0 0.0
    %1256 = vmatprep.subr.mxu0 0.0
    %1257 = vmatpush1.xpose.msra.mxu0 0.0
    %1258 = vmatprep.subr.mxu0 0.0
    %1259 = vmatpush1.xpose.msra.mxu0 0.0
    %1260 = vmatprep.subr.mxu0 0.0
    %1261 = vmatpush1.xpose.msra.mxu0 0.0
    %1262 = vmatprep.subr.mxu0 0.0
    %1263 = vmatpush1.xpose.msra.mxu0 0.0
    %1264 = vmatprep.subr.mxu0 0.0
    %1265 = vmatpush1.xpose.msra.mxu0 0.0
    %1266 = vmatprep.subr.mxu0 0.0
    %1267 = vmatpush1.xpose.msra.mxu0 0.0
    %1268 = vmatprep.subr.mxu0 0.0
    %1269 = vmatpush1.xpose.msra.mxu0 0.0
    %1270 = vmatprep.subr.mxu0 0.0
    %1271 = vmatpush1.xpose.msra.mxu0 0.0
    %1272 = vmatprep.subr.mxu0 0.0
    %1273 = vmatpush1.xpose.msra.mxu0 0.0
    %1274 = vmatprep.subr.mxu0 0.0
    %1275 = vmatpush1.xpose.msra.mxu0 0.0
    %1276 = vmatprep.subr.mxu0 0.0
    %1277 = vmatpush1.xpose.msra.mxu0 0.0
    %1278 = vmatprep.subr.mxu0 0.0
    %1279 = vmatpush1.xpose.msra.mxu0 0.0
    %1280 = vmatprep.subr.mxu0 0.0
    %1281 = vmatpush1.xpose.msra.mxu0 0.0
    %1282 = vmatprep.subr.mxu0 0.0
    %1283 = vmatpush1.xpose.msra.mxu0 0.0
    %1284 = vmatprep.subr.mxu0 0.0
    %1285 = vmatpush1.xpose.msra.mxu0 0.0
    %1286 = vmatprep.subr.mxu0 0.0
    %1287 = vmatpush1.xpose.msra.mxu0 0.0
    %1288 = vmatprep.mubr.f32.mxu0 0.0
    %1289 = vmatmul.mubr.f32.gmra.mrb[0].mxu0 %v1216
    %v1290 = vpop.f32.mrb[0].mxu0
    %v1291 = vadd.f32 0.0, %v1290
    %v1292 = vpop.f32.mrb[0].mxu0
    %1293 = vmatprep.mubr.f32.mxu0 0.0
    %1294 = vmatmul.mubr.f32.gmra.mrb[0].mxu0 %v1218
    %v1295 = vpop.f32.mrb[0].mxu0
    %v1296 = vadd.f32 0.0, %v1295
    %v1297 = vpop.f32.mrb[0].mxu0
    %1298 = vdwg.mxu0
    %1301 = vrot.lane.b32.xlu0 %v810, 112
    %v1302 = vpop.permute.xlu0 %1301
    %1303 = vrot.lane.b32.xlu0 %v811, 112
    %v1304 = vpop.permute.xlu0 %1303
    %1307 = vrot.lane.b32.xlu0 %v822, 112
    %v1308 = vpop.permute.xlu0 %1307
    %1309 = vrot.lane.b32.xlu0 %v823, 112
    %v1310 = vpop.permute.xlu0 %1309
    %v1311 = vsel %vm225, %v1302, 0
    %v1313 = vsel %vm225, %v1304, 0
    %v1315 = vsel %vm225, %v1308, 0
    %v1317 = vsel %vm225, %v1310, 0
    %1319 = vmatprep.subr.mxu0 0.0
    %1320 = vmatpush1.xpose.msra.mxu0 %v1315
    %1321 = vmatprep.subr.mxu0 0.0
    %1322 = vmatpush1.xpose.msra.mxu0 %v1317
    %1323 = vmatprep.subr.mxu0 0.0
    %1324 = vmatpush1.xpose.msra.mxu0 0.0
    %1325 = vmatprep.subr.mxu0 0.0
    %1326 = vmatpush1.xpose.msra.mxu0 0.0
    %1327 = vmatprep.subr.mxu0 0.0
    %1328 = vmatpush1.xpose.msra.mxu0 0.0
    %1329 = vmatprep.subr.mxu0 0.0
    %1330 = vmatpush1.xpose.msra.mxu0 0.0
    %1331 = vmatprep.subr.mxu0 0.0
    %1332 = vmatpush1.xpose.msra.mxu0 0.0
    %1333 = vmatprep.subr.mxu0 0.0
    %1334 = vmatpush1.xpose.msra.mxu0 0.0
    %1335 = vmatprep.subr.mxu0 0.0
    %1336 = vmatpush1.xpose.msra.mxu0 0.0
    %1337 = vmatprep.subr.mxu0 0.0
    %1338 = vmatpush1.xpose.msra.mxu0 0.0
    %1339 = vmatprep.subr.mxu0 0.0
    %1340 = vmatpush1.xpose.msra.mxu0 0.0
    %1341 = vmatprep.subr.mxu0 0.0
    %1342 = vmatpush1.xpose.msra.mxu0 0.0
    %1343 = vmatprep.subr.mxu0 0.0
    %1344 = vmatpush1.xpose.msra.mxu0 0.0
    %1345 = vmatprep.subr.mxu0 0.0
    %1346 = vmatpush1.xpose.msra.mxu0 0.0
    %1347 = vmatprep.subr.mxu0 0.0
    %1348 = vmatpush1.xpose.msra.mxu0 0.0
    %1349 = vmatprep.subr.mxu0 0.0
    %1350 = vmatpush1.xpose.msra.mxu0 0.0
    %1351 = vmatprep.subr.mxu0 0.0
    %1352 = vmatpush1.xpose.msra.mxu0 0.0
    %1353 = vmatprep.subr.mxu0 0.0
    %1354 = vmatpush1.xpose.msra.mxu0 0.0
    %1355 = vmatprep.subr.mxu0 0.0
    %1356 = vmatpush1.xpose.msra.mxu0 0.0
    %1357 = vmatprep.subr.mxu0 0.0
    %1358 = vmatpush1.xpose.msra.mxu0 0.0
    %1359 = vmatprep.subr.mxu0 0.0
    %1360 = vmatpush1.xpose.msra.mxu0 0.0
    %1361 = vmatprep.subr.mxu0 0.0
    %1362 = vmatpush1.xpose.msra.mxu0 0.0
    %1363 = vmatprep.subr.mxu0 0.0
    %1364 = vmatpush1.xpose.msra.mxu0 0.0
    %1365 = vmatprep.subr.mxu0 0.0
    %1366 = vmatpush1.xpose.msra.mxu0 0.0
    %1367 = vmatprep.subr.mxu0 0.0
    %1368 = vmatpush1.xpose.msra.mxu0 0.0
    %1369 = vmatprep.subr.mxu0 0.0
    %1370 = vmatpush1.xpose.msra.mxu0 0.0
    %1371 = vmatprep.subr.mxu0 0.0
    %1372 = vmatpush1.xpose.msra.mxu0 0.0
    %1373 = vmatprep.subr.mxu0 0.0
    %1374 = vmatpush1.xpose.msra.mxu0 0.0
    %1375 = vmatprep.subr.mxu0 0.0
    %1376 = vmatpush1.xpose.msra.mxu0 0.0
    %1377 = vmatprep.subr.mxu0 0.0
    %1378 = vmatpush1.xpose.msra.mxu0 0.0
    %1379 = vmatprep.subr.mxu0 0.0
    %1380 = vmatpush1.xpose.msra.mxu0 0.0
    %1381 = vmatprep.subr.mxu0 0.0
    %1382 = vmatpush1.xpose.msra.mxu0 0.0
    %1383 = vmatprep.mubr.f32.mxu0 0.0
    %1384 = vmatmul.mubr.f32.gmra.mrb[0].mxu0 %v1311
    %v1385 = vpop.f32.mrb[0].mxu0
    %v1386 = vadd.f32 0.0, %v1385
    %v1387 = vpop.f32.mrb[0].mxu0
    %1388 = vmatprep.mubr.f32.mxu0 0.0
    %1389 = vmatmul.mubr.f32.gmra.mrb[0].mxu0 %v1313
    %v1390 = vpop.f32.mrb[0].mxu0
    %v1391 = vadd.f32 0.0, %v1390
    %v1392 = vpop.f32.mrb[0].mxu0
    %1393 = vdwg.mxu0
    %v1394 = vmul.f32 %v800, %v812
    %v1395 = vmul.f32 %v801, %v813
    %v1396 = vmul.f32 %v802, %v814
    %v1397 = vmul.f32 %v803, %v815
    %v1398 = vmul.f32 %v804, %v816
    %v1399 = vmul.f32 %v805, %v817
    %v1400 = vmul.f32 %v806, %v818
    %v1401 = vmul.f32 %v807, %v819
    %v1402 = vmul.f32 %v808, %v820
    %v1403 = vmul.f32 %v809, %v821
    %v1404 = vmul.f32 %v810, %v822
    %v1405 = vmul.f32 %v811, %v823
    %1418 = vrot.lane.b32.xlu0 %v1394, 112
    %v1419 = vpop.permute.xlu0 %1418
    %1420 = vrot.lane.b32.xlu0 %v1395, 112
    %v1421 = vpop.permute.xlu0 %1420
    %1422 = vrot.lane.b32.xlu0 %v1396, 112
    %v1423 = vpop.permute.xlu0 %1422
    %1424 = vrot.lane.b32.xlu0 %v1397, 112
    %v1425 = vpop.permute.xlu0 %1424
    %1426 = vrot.lane.b32.xlu0 %v1398, 112
    %v1427 = vpop.permute.xlu0 %1426
    %1428 = vrot.lane.b32.xlu0 %v1399, 112
    %v1429 = vpop.permute.xlu0 %1428
    %1430 = vrot.lane.b32.xlu0 %v1400, 112
    %v1431 = vpop.permute.xlu0 %1430
    %1432 = vrot.lane.b32.xlu0 %v1401, 112
    %v1433 = vpop.permute.xlu0 %1432
    %1434 = vrot.lane.b32.xlu0 %v1402, 112
    %v1435 = vpop.permute.xlu0 %1434
    %1436 = vrot.lane.b32.xlu0 %v1403, 112
    %v1437 = vpop.permute.xlu0 %1436
    %1438 = vrot.lane.b32.xlu0 %v1404, 112
    %v1439 = vpop.permute.xlu0 %1438
    %1440 = vrot.lane.b32.xlu0 %v1405, 112
    %v1441 = vpop.permute.xlu0 %1440
    %v1454 = vsel %vm225, %v1419, 0.0
    %1455 = vadd.xlane.f32.xlu0 %v1454
    %v1456 = vpop.xlane.xlu0 %1455
    %v1457 = vsel %vm225, %v1421, 0.0
    %1458 = vadd.xlane.f32.xlu0 %v1457
    %v1459 = vpop.xlane.xlu0 %1458
    %v1460 = vsel %vm225, %v1423, 0.0
    %1461 = vadd.xlane.f32.xlu0 %v1460
    %v1462 = vpop.xlane.xlu0 %1461
    %v1463 = vsel %vm225, %v1425, 0.0
    %1464 = vadd.xlane.f32.xlu0 %v1463
    %v1465 = vpop.xlane.xlu0 %1464
    %v1466 = vsel %vm225, %v1427, 0.0
    %1467 = vadd.xlane.f32.xlu0 %v1466
    %v1468 = vpop.xlane.xlu0 %1467
    %v1469 = vsel %vm225, %v1429, 0.0
    %1470 = vadd.xlane.f32.xlu0 %v1469
    %v1471 = vpop.xlane.xlu0 %1470
    %v1472 = vsel %vm225, %v1431, 0.0
    %1473 = vadd.xlane.f32.xlu0 %v1472
    %v1474 = vpop.xlane.xlu0 %1473
    %v1475 = vsel %vm225, %v1433, 0.0
    %1476 = vadd.xlane.f32.xlu0 %v1475
    %v1477 = vpop.xlane.xlu0 %1476
    %v1478 = vsel %vm225, %v1435, 0.0
    %1479 = vadd.xlane.f32.xlu0 %v1478
    %v1480 = vpop.xlane.xlu0 %1479
    %v1481 = vsel %vm225, %v1437, 0.0
    %1482 = vadd.xlane.f32.xlu0 %v1481
    %v1483 = vpop.xlane.xlu0 %1482
    %v1484 = vsel %vm225, %v1439, 0.0
    %1485 = vadd.xlane.f32.xlu0 %v1484
    %v1486 = vpop.xlane.xlu0 %1485
    %v1487 = vsel %vm225, %v1441, 0.0
    %1488 = vadd.xlane.f32.xlu0 %v1487
    %v1489 = vpop.xlane.xlu0 %1488
    %v1490 = vlaneseq
    %v1491 = vshrl.u32 %v1490, 7
    %v1492 = vadd.s32 %v1491, 8
    %v1493 = vlaneseq
    %v1494 = vand.u32 %v1493, 127
    %vm1495 = vcmp.eq.s32.totalorder %v1491, %v1494
    %vm1496 = vcmp.eq.s32.totalorder %v1492, %v1494
    %v1497 = vsel %vm1495, 1, 0
    %v1498 = vsel %vm1496, 1, 0
    %vm1499 = vcmp.eq.s32.totalorder %v1497, 1
    %vm1500 = vcmp.eq.s32.totalorder %v1498, 1
    %v1501 = vsel %vm1499, 0.0, %v911
    %v1502 = vsel %vm1500, 0.0, %v916
    %v1503 = vsel %vm1499, 0.0, %v1006
    %v1504 = vsel %vm1500, 0.0, %v1011
    %v1505 = vsel %vm1499, 0.0, %v1101
    %v1506 = vsel %vm1500, 0.0, %v1106
    %v1507 = vsel %vm1499, 0.0, %v1196
    %v1508 = vsel %vm1500, 0.0, %v1201
    %v1509 = vsel %vm1499, 0.0, %v1291
    %v1510 = vsel %vm1500, 0.0, %v1296
    %v1511 = vsel %vm1499, 0.0, %v1386
    %v1512 = vsel %vm1500, 0.0, %v1391
    %v1513 = vsel %vm225, %v1501, -inf
    %1514 = vmax.xlane.f32.xlu0 %v1513
    %v1515 = vpop.xlane.xlu0 %1514
    %v1516 = vsel %vm225, %v1502, -inf
    %1517 = vmax.xlane.f32.xlu0 %v1516
    %v1518 = vpop.xlane.xlu0 %1517
    %v1519 = vsel %vm225, %v1503, -inf
    %1520 = vmax.xlane.f32.xlu0 %v1519
    %v1521 = vpop.xlane.xlu0 %1520
    %v1522 = vsel %vm225, %v1504, -inf
    %1523 = vmax.xlane.f32.xlu0 %v1522
    %v1524 = vpop.xlane.xlu0 %1523
    %v1525 = vsel %vm225, %v1505, -inf
    %1526 = vmax.xlane.f32.xlu0 %v1525
    %v1527 = vpop.xlane.xlu0 %1526
    %v1528 = vsel %vm225, %v1506, -inf
    %1529 = vmax.xlane.f32.xlu0 %v1528
    %v1530 = vpop.xlane.xlu0 %1529
    %v1531 = vsel %vm225, %v1507, -inf
    %1532 = vmax.xlane.f32.xlu0 %v1531
    %v1533 = vpop.xlane.xlu0 %1532
    %v1534 = vsel %vm225, %v1508, -inf
    %1535 = vmax.xlane.f32.xlu0 %v1534
    %v1536 = vpop.xlane.xlu0 %1535
    %v1537 = vsel %vm225, %v1509, -inf
    %1538 = vmax.xlane.f32.xlu0 %v1537
    %v1539 = vpop.xlane.xlu0 %1538
    %v1540 = vsel %vm225, %v1510, -inf
    %1541 = vmax.xlane.f32.xlu0 %v1540
    %v1542 = vpop.xlane.xlu0 %1541
    %v1543 = vsel %vm225, %v1511, -inf
    %1544 = vmax.xlane.f32.xlu0 %v1543
    %v1545 = vpop.xlane.xlu0 %1544
    %v1546 = vsel %vm225, %v1512, -inf
    %1547 = vmax.xlane.f32.xlu0 %v1546
    %v1548 = vpop.xlane.xlu0 %1547
    %v1549 = vmax.f32 %v1513, %v1516
    %v1550 = vrot.slane %v1549, 4
    %v1551 = vmax.f32 %v1549, %v1550
    %v1552 = vrot.slane %v1551, 2
    %v1553 = vmax.f32 %v1551, %v1552
    %v1554 = vrot.slane %v1553, 1
    %v1555 = vmax.f32 %v1553, %v1554
    %v1556 = vmax.f32 %v1519, %v1522
    %v1557 = vrot.slane %v1556, 4
    %v1558 = vmax.f32 %v1556, %v1557
    %v1559 = vrot.slane %v1558, 2
    %v1560 = vmax.f32 %v1558, %v1559
    %v1561 = vrot.slane %v1560, 1
    %v1562 = vmax.f32 %v1560, %v1561
    %v1563 = vmax.f32 %v1525, %v1528
    %v1564 = vrot.slane %v1563, 4
    %v1565 = vmax.f32 %v1563, %v1564
    %v1566 = vrot.slane %v1565, 2
    %v1567 = vmax.f32 %v1565, %v1566
    %v1568 = vrot.slane %v1567, 1
    %v1569 = vmax.f32 %v1567, %v1568
    %v1570 = vmax.f32 %v1531, %v1534
    %v1571 = vrot.slane %v1570, 4
    %v1572 = vmax.f32 %v1570, %v1571
    %v1573 = vrot.slane %v1572, 2
    %v1574 = vmax.f32 %v1572, %v1573
    %v1575 = vrot.slane %v1574, 1
    %v1576 = vmax.f32 %v1574, %v1575
    %v1577 = vmax.f32 %v1537, %v1540
    %v1578 = vrot.slane %v1577, 4
    %v1579 = vmax.f32 %v1577, %v1578
    %v1580 = vrot.slane %v1579, 2
    %v1581 = vmax.f32 %v1579, %v1580
    %v1582 = vrot.slane %v1581, 1
    %v1583 = vmax.f32 %v1581, %v1582
    %v1584 = vmax.f32 %v1543, %v1546
    %v1585 = vrot.slane %v1584, 4
    %v1586 = vmax.f32 %v1584, %v1585
    %v1587 = vrot.slane %v1586, 2
    %v1588 = vmax.f32 %v1586, %v1587
    %v1589 = vrot.slane %v1588, 1
    %v1590 = vmax.f32 %v1588, %v1589
    %v1591 = vadd.f32 %v1515, 0.5
    %v1592 = vadd.f32 %v1518, 0.5
    %v1593 = vadd.f32 %v1521, 0.5
    %v1594 = vadd.f32 %v1524, 0.5
    %v1595 = vadd.f32 %v1527, 0.5
    %v1596 = vadd.f32 %v1530, 0.5
    %v1597 = vadd.f32 %v1533, 0.5
    %v1598 = vadd.f32 %v1536, 0.5
    %v1599 = vadd.f32 %v1539, 0.5
    %v1600 = vadd.f32 %v1542, 0.5
    %v1601 = vadd.f32 %v1545, 0.5
    %v1602 = vadd.f32 %v1548, 0.5
    %v1603 = vsub.f32 %v1591, %v1456
    %v1604 = vsub.f32 %v1592, %v1459
    %v1605 = vsub.f32 %v1593, %v1462
    %v1606 = vsub.f32 %v1594, %v1465
    %v1607 = vsub.f32 %v1595, %v1468
    %v1608 = vsub.f32 %v1596, %v1471
    %v1609 = vsub.f32 %v1597, %v1474
    %v1610 = vsub.f32 %v1598, %v1477
    %v1611 = vsub.f32 %v1599, %v1480
    %v1612 = vsub.f32 %v1600, %v1483
    %v1613 = vsub.f32 %v1601, %v1486
    %v1614 = vsub.f32 %v1602, %v1489
    %v1615 = vmax.f32 %v1603, 0.0
    %v1616 = vmax.f32 %v1604, 0.0
    %v1617 = vmax.f32 %v1605, 0.0
    %v1618 = vmax.f32 %v1606, 0.0
    %v1619 = vmax.f32 %v1607, 0.0
    %v1620 = vmax.f32 %v1608, 0.0
    %v1621 = vmax.f32 %v1609, 0.0
    %v1622 = vmax.f32 %v1610, 0.0
    %v1623 = vmax.f32 %v1611, 0.0
    %v1624 = vmax.f32 %v1612, 0.0
    %v1625 = vmax.f32 %v1613, 0.0
    %v1626 = vmax.f32 %v1614, 0.0
    %v1627 = vadd.f32 %v1555, 0.5
    %v1628 = vadd.f32 %v1562, 0.5
    %v1629 = vadd.f32 %v1569, 0.5
    %v1630 = vadd.f32 %v1576, 0.5
    %v1631 = vadd.f32 %v1583, 0.5
    %v1632 = vadd.f32 %v1590, 0.5
    %v1645 = vlaneseq
    %v1646 = vshrl.u32 %v1645, 7
    %v1647 = vsub.s32 %v1494, %v1646
    %v1648 = vrot.slane %v1456, %v1647
    %v1649 = vadd.s32 %v1494, 4294967288
    %v1650 = vlaneseq
    %v1651 = vshrl.u32 %v1650, 7
    %v1652 = vsub.s32 %v1649, %v1651
    %v1653 = vrot.slane %v1459, %v1652
    %vm1654 = vcmask 130112
    %v1655 = vsel %vm1654, %v1653, %v1648
    %v1656 = vlaneseq
    %v1657 = vshrl.u32 %v1656, 7
    %v1658 = vsub.s32 %v1494, %v1657
    %v1659 = vrot.slane %v1462, %v1658
    %v1660 = vlaneseq
    %v1661 = vshrl.u32 %v1660, 7
    %v1662 = vsub.s32 %v1649, %v1661
    %v1663 = vrot.slane %v1465, %v1662
    %v1664 = vsel %vm1654, %v1663, %v1659
    %v1665 = vlaneseq
    %v1666 = vshrl.u32 %v1665, 7
    %v1667 = vsub.s32 %v1494, %v1666
    %v1668 = vrot.slane %v1468, %v1667
    %v1669 = vlaneseq
    %v1670 = vshrl.u32 %v1669, 7
    %v1671 = vsub.s32 %v1649, %v1670
    %v1672 = vrot.slane %v1471, %v1671
    %v1673 = vsel %vm1654, %v1672, %v1668
    %v1674 = vlaneseq
    %v1675 = vshrl.u32 %v1674, 7
    %v1676 = vsub.s32 %v1494, %v1675
    %v1677 = vrot.slane %v1474, %v1676
    %v1678 = vlaneseq
    %v1679 = vshrl.u32 %v1678, 7
    %v1680 = vsub.s32 %v1649, %v1679
    %v1681 = vrot.slane %v1477, %v1680
    %v1682 = vsel %vm1654, %v1681, %v1677
    %v1683 = vlaneseq
    %v1684 = vshrl.u32 %v1683, 7
    %v1685 = vsub.s32 %v1494, %v1684
    %v1686 = vrot.slane %v1480, %v1685
    %v1687 = vlaneseq
    %v1688 = vshrl.u32 %v1687, 7
    %v1689 = vsub.s32 %v1649, %v1688
    %v1690 = vrot.slane %v1483, %v1689
    %v1691 = vsel %vm1654, %v1690, %v1686
    %v1692 = vlaneseq
    %v1693 = vshrl.u32 %v1692, 7
    %v1694 = vsub.s32 %v1494, %v1693
    %v1695 = vrot.slane %v1486, %v1694
    %v1696 = vlaneseq
    %v1697 = vshrl.u32 %v1696, 7
    %v1698 = vsub.s32 %v1649, %v1697
    %v1699 = vrot.slane %v1489, %v1698
    %v1700 = vsel %vm1654, %v1699, %v1695
    %v1707 = vsub.f32 %v1627, %v1655
    %v1708 = vsub.f32 %v1628, %v1664
    %v1709 = vsub.f32 %v1629, %v1673
    %v1710 = vsub.f32 %v1630, %v1682
    %v1711 = vsub.f32 %v1631, %v1691
    %v1712 = vsub.f32 %v1632, %v1700
    %v1713 = vmax.f32 %v1707, 0.0
    %v1714 = vmax.f32 %v1708, 0.0
    %v1715 = vmax.f32 %v1709, 0.0
    %v1716 = vmax.f32 %v1710, 0.0
    %v1717 = vmax.f32 %v1711, 0.0
    %v1718 = vmax.f32 %v1712, 0.0
    %v1725 = vlaneseq
    %v1726 = vshrl.u32 %v1725, 7
    %v1727 = vsub.s32 0, %v1726
    %v1728 = vrot.slane %v1713, %v1727
    %1730 = vbcast.lane.b32.xlu0 %v1728, 256
    %v1731 = vpop.permute.xlu0 %1730
    %s1733 = sor.u32 256, 8
    %1734 = vbcast.lane.b32.xlu0 %v1728, %s1733
    %v1735 = vpop.permute.xlu0 %1734
    %v1736 = vlaneseq
    %v1737 = vshrl.u32 %v1736, 7
    %v1738 = vsub.s32 0, %v1737
    %v1739 = vrot.slane %v1714, %v1738
    %1741 = vbcast.lane.b32.xlu0 %v1739, 256
    %v1742 = vpop.permute.xlu0 %1741
    %s1744 = sor.u32 256, 8
    %1745 = vbcast.lane.b32.xlu0 %v1739, %s1744
    %v1746 = vpop.permute.xlu0 %1745
    %v1747 = vlaneseq
    %v1748 = vshrl.u32 %v1747, 7
    %v1749 = vsub.s32 0, %v1748
    %v1750 = vrot.slane %v1715, %v1749
    %1752 = vbcast.lane.b32.xlu0 %v1750, 256
    %v1753 = vpop.permute.xlu0 %1752
    %s1755 = sor.u32 256, 8
    %1756 = vbcast.lane.b32.xlu0 %v1750, %s1755
    %v1757 = vpop.permute.xlu0 %1756
    %v1758 = vlaneseq
    %v1759 = vshrl.u32 %v1758, 7
    %v1760 = vsub.s32 0, %v1759
    %v1761 = vrot.slane %v1716, %v1760
    %1763 = vbcast.lane.b32.xlu0 %v1761, 256
    %v1764 = vpop.permute.xlu0 %1763
    %s1766 = sor.u32 256, 8
    %1767 = vbcast.lane.b32.xlu0 %v1761, %s1766
    %v1768 = vpop.permute.xlu0 %1767
    %v1769 = vlaneseq
    %v1770 = vshrl.u32 %v1769, 7
    %v1771 = vsub.s32 0, %v1770
    %v1772 = vrot.slane %v1717, %v1771
    %1774 = vbcast.lane.b32.xlu0 %v1772, 256
    %v1775 = vpop.permute.xlu0 %1774
    %s1777 = sor.u32 256, 8
    %1778 = vbcast.lane.b32.xlu0 %v1772, %s1777
    %v1779 = vpop.permute.xlu0 %1778
    %v1780 = vlaneseq
    %v1781 = vshrl.u32 %v1780, 7
    %v1782 = vsub.s32 0, %v1781
    %v1783 = vrot.slane %v1718, %v1782
    %1785 = vbcast.lane.b32.xlu0 %v1783, 256
    %v1786 = vpop.permute.xlu0 %1785
    %s1788 = sor.u32 256, 8
    %1789 = vbcast.lane.b32.xlu0 %v1783, %s1788
    %v1790 = vpop.permute.xlu0 %1789
    %v1803 = vadd.f32 %v1615, %v1731
    %v1804 = vadd.f32 %v1616, %v1735
    %v1805 = vadd.f32 %v1617, %v1742
    %v1806 = vadd.f32 %v1618, %v1746
    %v1807 = vadd.f32 %v1619, %v1753
    %v1808 = vadd.f32 %v1620, %v1757
    %v1809 = vadd.f32 %v1621, %v1764
    %v1810 = vadd.f32 %v1622, %v1768
    %v1811 = vadd.f32 %v1623, %v1775
    %v1812 = vadd.f32 %v1624, %v1779
    %v1813 = vadd.f32 %v1625, %v1786
    %v1814 = vadd.f32 %v1626, %v1790
    %v1815 = vmul.f32 %v1803, 0.010416667
    %v1816 = vmul.f32 %v1804, 0.010416667
    %v1817 = vmul.f32 %v1805, 0.010416667
    %v1818 = vmul.f32 %v1806, 0.010416667
    %v1819 = vmul.f32 %v1807, 0.010416667
    %v1820 = vmul.f32 %v1808, 0.010416667
    %v1821 = vmul.f32 %v1809, 0.010416667
    %v1822 = vmul.f32 %v1810, 0.010416667
    %v1823 = vmul.f32 %v1811, 0.010416667
    %v1824 = vmul.f32 %v1812, 0.010416667
    %v1825 = vmul.f32 %v1813, 0.010416667
    %v1826 = vmul.f32 %v1814, 0.010416667
    %1839 = vset.pattern.permute.xlu0 0
    %1840 = vperm.xlu0 %1839, %v1815
    %v1841 = vpop.permute.xlu0 %1840
    %1842 = vset.pattern.permute.xlu0 0
    %1843 = vperm.xlu0 %1842, %v1816
    %v1844 = vpop.permute.xlu0 %1843
    %1845 = vset.pattern.permute.xlu0 0
    %1846 = vperm.xlu0 %1845, %v1817
    %v1847 = vpop.permute.xlu0 %1846
    %1848 = vset.pattern.permute.xlu0 0
    %1849 = vperm.xlu0 %1848, %v1818
    %v1850 = vpop.permute.xlu0 %1849
    %1851 = vset.pattern.permute.xlu0 0
    %1852 = vperm.xlu0 %1851, %v1819
    %v1853 = vpop.permute.xlu0 %1852
    %1854 = vset.pattern.permute.xlu0 0
    %1855 = vperm.xlu0 %1854, %v1820
    %v1856 = vpop.permute.xlu0 %1855
    %1857 = vset.pattern.permute.xlu0 0
    %1858 = vperm.xlu0 %1857, %v1821
    %v1859 = vpop.permute.xlu0 %1858
    %1860 = vset.pattern.permute.xlu0 0
    %1861 = vperm.xlu0 %1860, %v1822
    %v1862 = vpop.permute.xlu0 %1861
    %1863 = vset.pattern.permute.xlu0 0
    %1864 = vperm.xlu0 %1863, %v1823
    %v1865 = vpop.permute.xlu0 %1864
    %1866 = vset.pattern.permute.xlu0 0
    %1867 = vperm.xlu0 %1866, %v1824
    %v1868 = vpop.permute.xlu0 %1867
    %1869 = vset.pattern.permute.xlu0 0
    %1870 = vperm.xlu0 %1869, %v1825
    %v1871 = vpop.permute.xlu0 %1870
    %1872 = vset.pattern.permute.xlu0 0
    %1873 = vperm.xlu0 %1872, %v1826
    %v1874 = vpop.permute.xlu0 %1873
    %v1875 = vlaneseq
    %v1876 = vshrl.u32 %v1875, 7
    %v1877 = vsub.s32 %v1494, %v1876
    %v1878 = vrot.slane %v1841, %v1877
    %v1879 = vlaneseq
    %v1880 = vshrl.u32 %v1879, 7
    %v1881 = vsub.s32 %v1649, %v1880
    %v1882 = vrot.slane %v1844, %v1881
    %v1883 = vsel %vm1654, %v1882, %v1878
    %v1884 = vlaneseq
    %v1885 = vshrl.u32 %v1884, 7
    %v1886 = vsub.s32 %v1494, %v1885
    %v1887 = vrot.slane %v1847, %v1886
    %v1888 = vlaneseq
    %v1889 = vshrl.u32 %v1888, 7
    %v1890 = vsub.s32 %v1649, %v1889
    %v1891 = vrot.slane %v1850, %v1890
    %v1892 = vsel %vm1654, %v1891, %v1887
    %v1893 = vlaneseq
    %v1894 = vshrl.u32 %v1893, 7
    %v1895 = vsub.s32 %v1494, %v1894
    %v1896 = vrot.slane %v1853, %v1895
    %v1897 = vlaneseq
    %v1898 = vshrl.u32 %v1897, 7
    %v1899 = vsub.s32 %v1649, %v1898
    %v1900 = vrot.slane %v1856, %v1899
    %v1901 = vsel %vm1654, %v1900, %v1896
    %v1902 = vlaneseq
    %v1903 = vshrl.u32 %v1902, 7
    %v1904 = vsub.s32 %v1494, %v1903
    %v1905 = vrot.slane %v1859, %v1904
    %v1906 = vlaneseq
    %v1907 = vshrl.u32 %v1906, 7
    %v1908 = vsub.s32 %v1649, %v1907
    %v1909 = vrot.slane %v1862, %v1908
    %v1910 = vsel %vm1654, %v1909, %v1905
    %v1911 = vlaneseq
    %v1912 = vshrl.u32 %v1911, 7
    %v1913 = vsub.s32 %v1494, %v1912
    %v1914 = vrot.slane %v1865, %v1913
    %v1915 = vlaneseq
    %v1916 = vshrl.u32 %v1915, 7
    %v1917 = vsub.s32 %v1649, %v1916
    %v1918 = vrot.slane %v1868, %v1917
    %v1919 = vsel %vm1654, %v1918, %v1914
    %v1920 = vlaneseq
    %v1921 = vshrl.u32 %v1920, 7
    %v1922 = vsub.s32 %v1494, %v1921
    %v1923 = vrot.slane %v1871, %v1922
    %v1924 = vlaneseq
    %v1925 = vshrl.u32 %v1924, 7
    %v1926 = vsub.s32 %v1649, %v1925
    %v1927 = vrot.slane %v1874, %v1926
    %v1928 = vsel %vm1654, %v1927, %v1923
    %vm1929 = vcmask 1041409
    %v1930 = vsel %vm1929, %v1892, %v1883
    %vm1931 = vcmask 1042434
    %v1932 = vsel %vm1931, %v1901, %v1930
    %vm1933 = vcmask 1043459
    %v1934 = vsel %vm1933, %v1910, %v1932
    %vm1935 = vcmask 1044484
    %v1936 = vsel %vm1935, %v1919, %v1934
    %vm1937 = vcmask 1045509
    %v1938 = vsel %vm1937, %v1928, %v1936
    %vm1940 = vcmask 128000
    %v1941 = vsel %vm1940, %v1938, 0.0
    %1942 = vadd.xlane.f32.xlu0 %v1941
    %v1943 = vpop.xlane.xlu0 %1942
    %v1944 = vrot.slane %v1943, 4
    %v1945 = vadd.f32 %v1943, %v1944
    %v1946 = vrot.slane %v1945, 2
    %v1947 = vadd.f32 %v1945, %v1946
    %v1948 = vrot.slane %v1947, 1
    %v1949 = vadd.f32 %v1947, %v1948
    %s1950 = vtos %v1949
    %s1951 = scalar_lea.smem [#allocation2], 0
    %1952 = sst [smem:[%s1951]] %s1950
    // Predicated region
    $region6: #{tpu_custom_call.1} parent=1 // pred_check
      _
    $region7: #{tpu_custom_call.1} parent=1 // pred_check_branch
      %1954 = sbr.rel (0) target = $region9
    $region8: #{tpu_custom_call.1} parent=1 // pred_region
      %s1956 = ssub.s32 16, 16
      %1957 = vsyncadd [#allocation3], %s1956
      %1960 = dma.smem_to_hbm [#allocation2], 16, %s1, [#allocation3]
    $region9: #{tpu_custom_call.1} parent=1 // pred_fallthru
      _
    // Predicated region
    $region10: #{tpu_custom_call.1} parent=1 // pred_check
      _
    $region11: #{tpu_custom_call.1} parent=1 // pred_check_branch
      %1962 = sbr.rel (0) target = $region13
    $region12: #{tpu_custom_call.1} parent=1 // pred_region
      %1963 = dma.done [#allocation3], 16
    $region13: #{tpu_custom_call.1} parent=1 // pred_fallthru
      _
    %1964 = sfence
    %1965 = vsyncpa [#allocation3], 1

</llo_original>
